<compile_context>
chip_gen: v7x
topology: tpu7x:2x2x1
jax: 0.10.0
libtpu: 0.0.40
codegen_flags: <defaults>
</compile_context>

<pallas_src>
import jax
import jax.numpy as jnp
from jax import lax
from jax.experimental import pallas as pl
from jax.experimental.pallas import tpu as pltpu

H = W = 7
NHW = H * W              # 49
CIN = 128
COUT = 32
C_TOTAL = 1664
C_PRE = 1536             # x369 (640) + first 28 of the 32-ch tensors (896)
C_TAIL = 128             # [x572 | x579 | conv | x593]
CONV_OFF = 64            # conv channels sit at [64:96) inside the tail block
K_IM2COL = 9 * CIN       # 1152
EPS = 1e-5


# ----------------------- fused conv + concat + BN kernel ---------------------
def fused_kernel(pre_ref, tail_base_ref, patch_ref, w_ref,
                 g_pre_ref, g_tail_ref, b_pre_ref, b_tail_ref, o_ref):
    # pre_ref       : (49, 1536) f32   passthrough channels 0:1536
    # tail_base_ref : (49, 128)  f32   [x572 | x579 | zeros(32) | x593]
    # patch_ref     : (49, 1152) bf16  im2col patches of x585, K = (kh, kw, cin)
    # w_ref         : (1152, 128) bf16 zero-padded conv weight (real cols 64:96)
    # g_*/b_*       : (1, 1536) / (1, 128) f32  BN gamma / beta slices
    # o_ref         : (49, 1664) f32   lane-dense concatenated + normalized out
    inv_n = jnp.float32(1.0 / NHW)

    def bn(x, g, b):
        # one-pass stats: var = E[x^2] - mean^2 (biased, training-mode BN)
        mean = jnp.sum(x, axis=0, keepdims=True) * inv_n
        var = jnp.sum(x * x, axis=0, keepdims=True) * inv_n - mean * mean
        a = g * lax.rsqrt(var + EPS)         # rsqrt -> EUP slot
        return x * a + (b - mean * a)        # single FMA per element

    # 3x3 conv as a single im2col matmul with K=1152 (one MXU fill/drain).
    conv = jnp.dot(patch_ref[...], w_ref[...],
                   preferred_element_type=jnp.float32)           # (49, 128) f32
    tail = tail_base_ref[...] + conv                             # passthrough + conv

    # 128-aligned stores into the lane-dense 1664-wide output slab.
    o_ref[:, :C_PRE] = bn(pre_ref[...], g_pre_ref[...], b_pre_ref[...])
    o_ref[:, C_PRE:] = bn(tail, g_tail_ref[...], b_tail_ref[...])


def fused_call(pre, tail_base, patch, w_wide, g_pre, g_tail, b_pre, b_tail):
    vmem = pl.BlockSpec(memory_space=pltpu.MemorySpace.VMEM)
    return pl.pallas_call(
        fused_kernel,
        out_shape=jax.ShapeDtypeStruct((NHW, C_TOTAL), jnp.float32),
        in_specs=[vmem] * 8,
        out_specs=vmem,
    )(pre, tail_base, patch, w_wide, g_pre, g_tail, b_pre, b_tail)


# ------------------------------- glue / wrapper ------------------------------
def forward(x585, x369, others_32, x593, conv_w, bn_gamma, bn_beta):
    # --- im2col patches of x585: (49, 1152), K ordered (kh, kw, cin) ---
    x_hwc = jnp.transpose(x585[0], (1, 2, 0))                      # (7,7,128)
    x_pad = jnp.pad(x_hwc, ((1, 1), (1, 1), (0, 0)))               # (9,9,128)
    taps = [x_pad[kh:kh + H, kw:kw + W, :]
            for kh in range(3) for kw in range(3)]
    patch = jnp.stack(taps, axis=2).reshape(NHW, K_IM2COL)         # (49, 1152)

    # --- weight: OIHW (32,128,3,3) -> (kh,kw,cin,cout) -> (1152,32),
    #     zero-padded to a 128-wide slab with real channels at [64:96) ---
    w_mat = jnp.transpose(conv_w, (2, 3, 1, 0)).reshape(K_IM2COL, COUT)
    w_wide = jnp.pad(w_mat, ((0, 0), (CONV_OFF, C_TAIL - CONV_OFF - COUT)))

    # --- passthrough channels: one NCHW concat + one transpose per group
    #     (instead of 32 tiny per-tensor transposes) ---
    pre_nchw = jnp.concatenate([x369] + list(others_32[:28]), axis=1)   # (1,1536,7,7)
    pre = jnp.transpose(pre_nchw[0], (1, 2, 0)).reshape(NHW, C_PRE)     # (49,1536)

    tail_nchw = jnp.concatenate(
        [others_32[28], others_32[29],
         jnp.zeros((1, COUT, H, W), jnp.float32), x593], axis=1)        # (1,128,7,7)
    tail_base = jnp.transpose(tail_nchw[0], (1, 2, 0)).reshape(NHW, C_TAIL)

    g = bn_gamma.reshape(1, C_TOTAL)
    b = bn_beta.reshape(1, C_TOTAL)

    out_flat = fused_call(
        pre, tail_base,
        patch.astype(jnp.bfloat16),     # bf16 MXU inputs, f32 accumulate
        w_wide.astype(jnp.bfloat16),
        g[:, :C_PRE], g[:, C_PRE:], b[:, :C_PRE], b[:, C_PRE:])

    # (49,1664) -> (1,1664,7,7)
    return jnp.transpose(out_flat.reshape(H, W, C_TOTAL), (2, 0, 1))[None]


# ------------------------------ reference (JAX) ------------------------------
def reference(x585, x369, others_32, x593, conv_w, bn_gamma, bn_beta):
    conv = lax.conv_general_dilated(
        x585, conv_w, window_strides=(1, 1), padding=((1, 1), (1, 1)),
        dimension_numbers=("NCHW", "OIHW", "NCHW"))
    cat = jnp.concatenate([x369] + list(others_32) + [conv, x593], axis=1)
    mean = jnp.mean(cat, axis=(0, 2, 3), keepdims=True)
    var = jnp.mean((cat - mean) ** 2, axis=(0, 2, 3), keepdims=True)
    g = bn_gamma.reshape(1, C_TOTAL, 1, 1)
    b = bn_beta.reshape(1, C_TOTAL, 1, 1)
    return (cat - mean) * lax.rsqrt(var + EPS) * g + b


if __name__ == "__main__":
    key = jax.random.PRNGKey(0)
    keys = jax.random.split(key, 40)

    x585 = jax.random.normal(keys[0], (1, 128, 7, 7), jnp.float32)
    x369 = jax.random.normal(keys[1], (1, 640, 7, 7), jnp.float32)
    # the 30 intermediate 32-channel tensors (x376 ... x579)
    others_32 = [jax.random.normal(keys[2 + i], (1, 32, 7, 7), jnp.float32)
                 for i in range(30)]
    x593 = jax.random.normal(keys[33], (1, 32, 7, 7), jnp.float32)

    # parameters (PyTorch defaults: BN weight=1, bias=0)
    fan_in = 128 * 3 * 3
    conv_w = jax.random.uniform(keys[34], (32, 128, 3, 3), jnp.float32,
                                -1.0 / jnp.sqrt(fan_in), 1.0 / jnp.sqrt(fan_in))
    bn_gamma = jnp.ones((C_TOTAL,), jnp.float32)
    bn_beta = jnp.zeros((C_TOTAL,), jnp.float32)

    fwd = jax.jit(forward)
    out = jax.block_until_ready(
        fwd(x585, x369, others_32, x593, conv_w, bn_gamma, bn_beta))

    ref = reference(x585, x369, others_32, x593, conv_w, bn_gamma, bn_beta)
    assert out.shape == (1, C_TOTAL, 7, 7)

    err = jnp.abs(out - ref)
    # passthrough channels go through an exact f32 path
    err_pass = jnp.maximum(jnp.max(err[:, :1600]), jnp.max(err[:, 1632:]))
    # conv channels use bf16 MXU inputs (f32 accumulate) -> looser tolerance
    err_conv = jnp.max(err[:, 1600:1632])
    assert float(err_pass) < 1e-3, ("passthrough mismatch", float(err_pass))
    assert float(err_conv) < 5e-2, ("conv mismatch", float(err_conv))

    print("KERNEL_OK")
</pallas_src>

<mosaic_0001>
module attributes {stable_mosaic.version = 11 : i64} {
  func.func @fused_kernel(%arg0: memref<49x1536xf32, #tpu.memory_space<vmem>>, %arg1: memref<49x128xf32, #tpu.memory_space<vmem>>, %arg2: memref<49x1152xbf16, #tpu.memory_space<vmem>>, %arg3: memref<1152x128xbf16, #tpu.memory_space<vmem>>, %arg4: memref<1x1536xf32, #tpu.memory_space<vmem>>, %arg5: memref<1x128xf32, #tpu.memory_space<vmem>>, %arg6: memref<1x1536xf32, #tpu.memory_space<vmem>>, %arg7: memref<1x128xf32, #tpu.memory_space<vmem>>, %arg8: memref<49x1664xf32, #tpu.memory_space<vmem>>) attributes {dimension_semantics = [], scalar_prefetch = 0 : i64, scratch_operands = 0 : i64, tpu.core_type = #tpu.core_type<tc>} {
    %c0 = arith.constant 0 : index
    %c0_0 = arith.constant 0 : index
    %0 = vector.load %arg2[%c0, %c0_0] : memref<49x1152xbf16, #tpu.memory_space<vmem>>, vector<49x1152xbf16>
    %c0_1 = arith.constant 0 : index
    %c0_2 = arith.constant 0 : index
    %1 = vector.load %arg3[%c0_1, %c0_2] : memref<1152x128xbf16, #tpu.memory_space<vmem>>, vector<1152x128xbf16>
    %cst = arith.constant dense<0.000000e+00> : vector<49x128xf32>
    %2 = tpu.matmul %0, %1, %cst {dimension_numbers = #tpu.dot_dimension_numbers<[1], [0], [0], [1], [0, 0, 1, 1], [], []>} : vector<49x1152xbf16>, vector<1152x128xbf16>, vector<49x128xf32> -> vector<49x128xf32>
    %c0_3 = arith.constant 0 : index
    %c0_4 = arith.constant 0 : index
    %3 = vector.load %arg1[%c0_3, %c0_4] : memref<49x128xf32, #tpu.memory_space<vmem>>, vector<49x128xf32>
    %4 = arith.addf %3, %2 : vector<49x128xf32>
    %c0_5 = arith.constant 0 : index
    %c0_6 = arith.constant 0 : index
    %5 = vector.load %arg0[%c0_5, %c0_6] : memref<49x1536xf32, #tpu.memory_space<vmem>>, vector<49x1536xf32>
    %c0_7 = arith.constant 0 : index
    %c0_8 = arith.constant 0 : index
    %6 = vector.load %arg4[%c0_7, %c0_8] : memref<1x1536xf32, #tpu.memory_space<vmem>>, vector<1x1536xf32>
    %c0_9 = arith.constant 0 : index
    %c0_10 = arith.constant 0 : index
    %7 = vector.load %arg6[%c0_9, %c0_10] : memref<1x1536xf32, #tpu.memory_space<vmem>>, vector<1x1536xf32>
    %cst_11 = arith.constant dense<0.000000e+00> : vector<1536xf32>
    %8 = vector.multi_reduction <add>, %5, %cst_11 [0] : vector<49x1536xf32> to vector<1536xf32>
    %9 = vector.shape_cast %8 : vector<1536xf32> to vector<1x1536xf32>
    %cst_12 = arith.constant 0.0204081628 : f32
    %10 = vector.broadcast %cst_12 : f32 to vector<1x1536xf32>
    %11 = arith.mulf %9, %10 : vector<1x1536xf32>
    %12 = arith.mulf %5, %5 : vector<49x1536xf32>
    %cst_13 = arith.constant dense<0.000000e+00> : vector<1536xf32>
    %13 = vector.multi_reduction <add>, %12, %cst_13 [0] : vector<49x1536xf32> to vector<1536xf32>
    %14 = vector.shape_cast %13 : vector<1536xf32> to vector<1x1536xf32>
    %cst_14 = arith.constant 0.0204081628 : f32
    %15 = vector.broadcast %cst_14 : f32 to vector<1x1536xf32>
    %16 = arith.mulf %14, %15 : vector<1x1536xf32>
    %17 = arith.mulf %11, %11 : vector<1x1536xf32>
    %18 = arith.subf %16, %17 : vector<1x1536xf32>
    %cst_15 = arith.constant 9.99999974E-6 : f32
    %19 = vector.broadcast %cst_15 : f32 to vector<1x1536xf32>
    %20 = arith.addf %18, %19 : vector<1x1536xf32>
    %21 = math.rsqrt %20 : vector<1x1536xf32>
    %22 = arith.mulf %6, %21 : vector<1x1536xf32>
    %23 = vector.broadcast %22 : vector<1x1536xf32> to vector<49x1536xf32>
    %24 = arith.mulf %5, %23 : vector<49x1536xf32>
    %25 = arith.mulf %11, %22 : vector<1x1536xf32>
    %26 = arith.subf %7, %25 : vector<1x1536xf32>
    %27 = vector.broadcast %26 : vector<1x1536xf32> to vector<49x1536xf32>
    %28 = arith.addf %24, %27 : vector<49x1536xf32>
    %c0_16 = arith.constant 0 : index
    %c0_17 = arith.constant 0 : index
    %29 = vector.load %arg8[%c0_16, %c0_17] : memref<49x1664xf32, #tpu.memory_space<vmem>>, vector<49x1536xf32>
    tpu.vector_store %arg8[%c0_16, %c0_17], %28 {strides = array<i32>} : memref<49x1664xf32, #tpu.memory_space<vmem>>, vector<49x1536xf32>,
    %c0_18 = arith.constant 0 : index
    %c0_19 = arith.constant 0 : index
    %30 = vector.load %arg5[%c0_18, %c0_19] : memref<1x128xf32, #tpu.memory_space<vmem>>, vector<1x128xf32>
    %c0_20 = arith.constant 0 : index
    %c0_21 = arith.constant 0 : index
    %31 = vector.load %arg7[%c0_20, %c0_21] : memref<1x128xf32, #tpu.memory_space<vmem>>, vector<1x128xf32>
    %cst_22 = arith.constant dense<0.000000e+00> : vector<128xf32>
    %32 = vector.multi_reduction <add>, %4, %cst_22 [0] : vector<49x128xf32> to vector<128xf32>
    %33 = vector.shape_cast %32 : vector<128xf32> to vector<1x128xf32>
    %cst_23 = arith.constant 0.0204081628 : f32
    %34 = vector.broadcast %cst_23 : f32 to vector<1x128xf32>
    %35 = arith.mulf %33, %34 : vector<1x128xf32>
    %36 = arith.mulf %4, %4 : vector<49x128xf32>
    %cst_24 = arith.constant dense<0.000000e+00> : vector<128xf32>
    %37 = vector.multi_reduction <add>, %36, %cst_24 [0] : vector<49x128xf32> to vector<128xf32>
    %38 = vector.shape_cast %37 : vector<128xf32> to vector<1x128xf32>
    %cst_25 = arith.constant 0.0204081628 : f32
    %39 = vector.broadcast %cst_25 : f32 to vector<1x128xf32>
    %40 = arith.mulf %38, %39 : vector<1x128xf32>
    %41 = arith.mulf %35, %35 : vector<1x128xf32>
    %42 = arith.subf %40, %41 : vector<1x128xf32>
    %cst_26 = arith.constant 9.99999974E-6 : f32
    %43 = vector.broadcast %cst_26 : f32 to vector<1x128xf32>
    %44 = arith.addf %42, %43 : vector<1x128xf32>
    %45 = math.rsqrt %44 : vector<1x128xf32>
    %46 = arith.mulf %30, %45 : vector<1x128xf32>
    %47 = vector.broadcast %46 : vector<1x128xf32> to vector<49x128xf32>
    %48 = arith.mulf %4, %47 : vector<49x128xf32>
    %49 = arith.mulf %35, %46 : vector<1x128xf32>
    %50 = arith.subf %31, %49 : vector<1x128xf32>
    %51 = vector.broadcast %50 : vector<1x128xf32> to vector<49x128xf32>
    %52 = arith.addf %48, %51 : vector<49x128xf32>
    %c0_27 = arith.constant 0 : index
    %c1536 = arith.constant 1536 : index
    %53 = vector.load %arg8[%c0_27, %c1536] : memref<49x1664xf32, #tpu.memory_space<vmem>>, vector<49x128xf32>
    tpu.vector_store %arg8[%c0_27, %c1536], %52 {strides = array<i32>} : memref<49x1664xf32, #tpu.memory_space<vmem>>, vector<49x128xf32>,
    return
  }
}

</mosaic_0001>

<llo_original>
// kernel: forward.1
$region0: #{forward.1}
  #allocation0 [shape = 'u32[]', space=smem, size = 0x4, offset = 0x4, fixed_abs, tag = 'smem constant byte address 0x4 - core index']
  #allocation1 [shape = 'u32[144,128]{1,0:T(1,128)}', space=vmem, size = 0x12000, scoped, tag = 'internal scratch']
  %s0 = inlined_call_operand.vmem [shape: f32[49,1536], index: 0, kind: input, shape index: {}]
  %s1 = inlined_call_operand.vmem [shape: f32[49,128], index: 1, kind: input, shape index: {}]
  %s2 = inlined_call_operand.vmem [shape: bf16[49,1152], index: 2, kind: input, shape index: {}]
  %s3 = inlined_call_operand.vmem [shape: bf16[1152,128], index: 3, kind: input, shape index: {}]
  %s4 = inlined_call_operand.vmem [shape: f32[1,1536], index: 4, kind: input, shape index: {}]
  %s5 = inlined_call_operand.vmem [shape: f32[1,128], index: 5, kind: input, shape index: {}]
  %s6 = inlined_call_operand.vmem [shape: f32[1,1536], index: 6, kind: input, shape index: {}]
  %s7 = inlined_call_operand.vmem [shape: f32[1,128], index: 7, kind: input, shape index: {}]
  %s8 = inlined_call_operand.vmem [shape: f32[49,1664], index: 8, kind: output, shape index: {}]
  %s9 = sld [smem:[#allocation0]]
  $region42: #{forward.1} parent=0
    _
  %s11 = ssub.s32 1, %s9
  %s12 = scalar_select 0, %s11, %s9
  // Predicated region
  $region2: #{forward.1} parent=0 // pred_check
    _
  $region3: #{forward.1} parent=0 // pred_check_branch
    %14 = sbr.rel (0) target = $region5
  $region4: #{forward.1} parent=0 // pred_region
    _
  $region5: #{forward.1} parent=0 // pred_fallthru
    _
  // Predicated region
  $region6: #{forward.1} parent=0 // pred_check
    _
  $region7: #{forward.1} parent=0 // pred_check_branch
    %16 = sbr.rel (0) target = $region9
  $region8: #{forward.1} parent=0 // pred_region
    _
  $region9: #{forward.1} parent=0 // pred_fallthru
    _
  // Predicated region
  $region10: #{forward.1} parent=0 // pred_check
    _
  $region11: #{forward.1} parent=0 // pred_check_branch
    %18 = sbr.rel (0) target = $region13
  $region12: #{forward.1} parent=0 // pred_region
    _
  $region13: #{forward.1} parent=0 // pred_fallthru
    _
  // Predicated region
  $region14: #{forward.1} parent=0 // pred_check
    _
  $region15: #{forward.1} parent=0 // pred_check_branch
    %20 = sbr.rel (0) target = $region17
  $region16: #{forward.1} parent=0 // pred_region
    _
  $region17: #{forward.1} parent=0 // pred_fallthru
    _
  // Predicated region
  $region18: #{forward.1} parent=0 // pred_check
    _
  $region19: #{forward.1} parent=0 // pred_check_branch
    %22 = sbr.rel (0) target = $region21
  $region20: #{forward.1} parent=0 // pred_region
    _
  $region21: #{forward.1} parent=0 // pred_fallthru
    _
  // Predicated region
  $region22: #{forward.1} parent=0 // pred_check
    _
  $region23: #{forward.1} parent=0 // pred_check_branch
    %24 = sbr.rel (0) target = $region25
  $region24: #{forward.1} parent=0 // pred_region
    _
  $region25: #{forward.1} parent=0 // pred_fallthru
    _
  // Predicated region
  $region26: #{forward.1} parent=0 // pred_check
    _
  $region27: #{forward.1} parent=0 // pred_check_branch
    %26 = sbr.rel (0) target = $region29
  $region28: #{forward.1} parent=0 // pred_region
    _
  $region29: #{forward.1} parent=0 // pred_fallthru
    _
  // Predicated region
  $region30: #{forward.1} parent=0 // pred_check
    _
  $region31: #{forward.1} parent=0 // pred_check_branch
    %28 = sbr.rel (0) target = $region33
  $region32: #{forward.1} parent=0 // pred_region
    _
  $region33: #{forward.1} parent=0 // pred_fallthru
    _
  %v30 = vld [vmem:[%s2] sm:$0xff]
  %v31 = vld [vmem:[%s2 + $0x8] sm:$0xff]
  %v32 = vld [vmem:[%s2 + $0x10] sm:$0xff]
  %v33 = vld [vmem:[%s2 + $0x18] sm:$0xff]
  %v34 = vld [vmem:[%s2 + $0x20] sm:$0xf]
  %v35 = vld [vmem:[%s2 + $0x24] sm:$0xff]
  %v36 = vld [vmem:[%s2 + $0x2c] sm:$0xff]
  %v37 = vld [vmem:[%s2 + $0x34] sm:$0xff]
  %v38 = vld [vmem:[%s2 + $0x3c] sm:$0xff]
  %v39 = vld [vmem:[%s2 + $0x44] sm:$0xf]
  %v40 = vld [vmem:[%s2 + $0x48] sm:$0xff]
  %v41 = vld [vmem:[%s2 + $0x50] sm:$0xff]
  %v42 = vld [vmem:[%s2 + $0x58] sm:$0xff]
  %v43 = vld [vmem:[%s2 + $0x60] sm:$0xff]
  %v44 = vld [vmem:[%s2 + $0x68] sm:$0xf]
  %v45 = vld [vmem:[%s2 + $0x6c] sm:$0xff]
  %v46 = vld [vmem:[%s2 + $0x74] sm:$0xff]
  %v47 = vld [vmem:[%s2 + $0x7c] sm:$0xff]
  %v48 = vld [vmem:[%s2 + $0x84] sm:$0xff]
  %v49 = vld [vmem:[%s2 + $0x8c] sm:$0xf]
  %v50 = vld [vmem:[%s2 + $0x90] sm:$0xff]
  %v51 = vld [vmem:[%s2 + $0x98] sm:$0xff]
  %v52 = vld [vmem:[%s2 + $0xa0] sm:$0xff]
  %v53 = vld [vmem:[%s2 + $0xa8] sm:$0xff]
  %v54 = vld [vmem:[%s2 + $0xb0] sm:$0xf]
  %v55 = vld [vmem:[%s2 + $0xb4] sm:$0xff]
  %v56 = vld [vmem:[%s2 + $0xbc] sm:$0xff]
  %v57 = vld [vmem:[%s2 + $0xc4] sm:$0xff]
  %v58 = vld [vmem:[%s2 + $0xcc] sm:$0xff]
  %v59 = vld [vmem:[%s2 + $0xd4] sm:$0xf]
  %v60 = vld [vmem:[%s2 + $0xd8] sm:$0x11]
  %v61 = vld [vmem:[%s2 + $0xe0] sm:$0x11]
  %v62 = vld [vmem:[%s2 + $0xe8] sm:$0x11]
  %v63 = vld [vmem:[%s2 + $0xf0] sm:$0x11]
  %v64 = vld [vmem:[%s2 + $0xf8] sm:$0x1]
  %v65 = vld [vmem:[%s3] sm:$0xf]
  %v66 = vld [vmem:[%s3 + $0x4] sm:$0xf]
  %v67 = vld [vmem:[%s3 + $0x8] sm:$0xf]
  %v68 = vld [vmem:[%s3 + $0xc] sm:$0xf]
  %v69 = vld [vmem:[%s3 + $0x10] sm:$0xf]
  %v70 = vld [vmem:[%s3 + $0x14] sm:$0xf]
  %v71 = vld [vmem:[%s3 + $0x18] sm:$0xf]
  %v72 = vld [vmem:[%s3 + $0x1c] sm:$0xf]
  %v73 = vld [vmem:[%s3 + $0x20] sm:$0xf]
  %v74 = vld [vmem:[%s3 + $0x24] sm:$0xf]
  %v75 = vld [vmem:[%s3 + $0x28] sm:$0xf]
  %v76 = vld [vmem:[%s3 + $0x2c] sm:$0xf]
  %v77 = vld [vmem:[%s3 + $0x30] sm:$0xf]
  %v78 = vld [vmem:[%s3 + $0x34] sm:$0xf]
  %v79 = vld [vmem:[%s3 + $0x38] sm:$0xf]
  %v80 = vld [vmem:[%s3 + $0x3c] sm:$0xf]
  %v81 = vld [vmem:[%s3 + $0x40] sm:$0xf]
  %v82 = vld [vmem:[%s3 + $0x44] sm:$0xf]
  %v83 = vld [vmem:[%s3 + $0x48] sm:$0xf]
  %v84 = vld [vmem:[%s3 + $0x4c] sm:$0xf]
  %v85 = vld [vmem:[%s3 + $0x50] sm:$0xf]
  %v86 = vld [vmem:[%s3 + $0x54] sm:$0xf]
  %v87 = vld [vmem:[%s3 + $0x58] sm:$0xf]
  %v88 = vld [vmem:[%s3 + $0x5c] sm:$0xf]
  %v89 = vld [vmem:[%s3 + $0x60] sm:$0xf]
  %v90 = vld [vmem:[%s3 + $0x64] sm:$0xf]
  %v91 = vld [vmem:[%s3 + $0x68] sm:$0xf]
  %v92 = vld [vmem:[%s3 + $0x6c] sm:$0xf]
  %v93 = vld [vmem:[%s3 + $0x70] sm:$0xf]
  %v94 = vld [vmem:[%s3 + $0x74] sm:$0xf]
  %v95 = vld [vmem:[%s3 + $0x78] sm:$0xf]
  %v96 = vld [vmem:[%s3 + $0x7c] sm:$0xf]
  %v97 = vld [vmem:[%s3 + $0x80] sm:$0xf]
  %v98 = vld [vmem:[%s3 + $0x84] sm:$0xf]
  %v99 = vld [vmem:[%s3 + $0x88] sm:$0xf]
  %v100 = vld [vmem:[%s3 + $0x8c] sm:$0xf]
  %v101 = vld [vmem:[%s3 + $0x90] sm:$0xf]
  %v102 = vld [vmem:[%s3 + $0x94] sm:$0xf]
  %v103 = vld [vmem:[%s3 + $0x98] sm:$0xf]
  %v104 = vld [vmem:[%s3 + $0x9c] sm:$0xf]
  %v105 = vld [vmem:[%s3 + $0xa0] sm:$0xf]
  %v106 = vld [vmem:[%s3 + $0xa4] sm:$0xf]
  %v107 = vld [vmem:[%s3 + $0xa8] sm:$0xf]
  %v108 = vld [vmem:[%s3 + $0xac] sm:$0xf]
  %v109 = vld [vmem:[%s3 + $0xb0] sm:$0xf]
  %v110 = vld [vmem:[%s3 + $0xb4] sm:$0xf]
  %v111 = vld [vmem:[%s3 + $0xb8] sm:$0xf]
  %v112 = vld [vmem:[%s3 + $0xbc] sm:$0xf]
  %v113 = vld [vmem:[%s3 + $0xc0] sm:$0xf]
  %v114 = vld [vmem:[%s3 + $0xc4] sm:$0xf]
  %v115 = vld [vmem:[%s3 + $0xc8] sm:$0xf]
  %v116 = vld [vmem:[%s3 + $0xcc] sm:$0xf]
  %v117 = vld [vmem:[%s3 + $0xd0] sm:$0xf]
  %v118 = vld [vmem:[%s3 + $0xd4] sm:$0xf]
  %v119 = vld [vmem:[%s3 + $0xd8] sm:$0xf]
  %v120 = vld [vmem:[%s3 + $0xdc] sm:$0xf]
  %v121 = vld [vmem:[%s3 + $0xe0] sm:$0xf]
  %v122 = vld [vmem:[%s3 + $0xe4] sm:$0xf]
  %v123 = vld [vmem:[%s3 + $0xe8] sm:$0xf]
  %v124 = vld [vmem:[%s3 + $0xec] sm:$0xf]
  %v125 = vld [vmem:[%s3 + $0xf0] sm:$0xf]
  %v126 = vld [vmem:[%s3 + $0xf4] sm:$0xf]
  %v127 = vld [vmem:[%s3 + $0xf8] sm:$0xf]
  %v128 = vld [vmem:[%s3 + $0xfc] sm:$0xf]
  %v129 = vld [vmem:[%s3 + $0x100] sm:$0xf]
  %v130 = vld [vmem:[%s3 + $0x104] sm:$0xf]
  %v131 = vld [vmem:[%s3 + $0x108] sm:$0xf]
  %v132 = vld [vmem:[%s3 + $0x10c] sm:$0xf]
  %v133 = vld [vmem:[%s3 + $0x110] sm:$0xf]
  %v134 = vld [vmem:[%s3 + $0x114] sm:$0xf]
  %v135 = vld [vmem:[%s3 + $0x118] sm:$0xf]
  %v136 = vld [vmem:[%s3 + $0x11c] sm:$0xf]
  %v137 = vld [vmem:[%s3 + $0x120] sm:$0xf]
  %v138 = vld [vmem:[%s3 + $0x124] sm:$0xf]
  %v139 = vld [vmem:[%s3 + $0x128] sm:$0xf]
  %v140 = vld [vmem:[%s3 + $0x12c] sm:$0xf]
  %v141 = vld [vmem:[%s3 + $0x130] sm:$0xf]
  %v142 = vld [vmem:[%s3 + $0x134] sm:$0xf]
  %v143 = vld [vmem:[%s3 + $0x138] sm:$0xf]
  %v144 = vld [vmem:[%s3 + $0x13c] sm:$0xf]
  %v145 = vld [vmem:[%s3 + $0x140] sm:$0xf]
  %v146 = vld [vmem:[%s3 + $0x144] sm:$0xf]
  %v147 = vld [vmem:[%s3 + $0x148] sm:$0xf]
  %v148 = vld [vmem:[%s3 + $0x14c] sm:$0xf]
  %v149 = vld [vmem:[%s3 + $0x150] sm:$0xf]
  %v150 = vld [vmem:[%s3 + $0x154] sm:$0xf]
  %v151 = vld [vmem:[%s3 + $0x158] sm:$0xf]
  %v152 = vld [vmem:[%s3 + $0x15c] sm:$0xf]
  %v153 = vld [vmem:[%s3 + $0x160] sm:$0xf]
  %v154 = vld [vmem:[%s3 + $0x164] sm:$0xf]
  %v155 = vld [vmem:[%s3 + $0x168] sm:$0xf]
  %v156 = vld [vmem:[%s3 + $0x16c] sm:$0xf]
  %v157 = vld [vmem:[%s3 + $0x170] sm:$0xf]
  %v158 = vld [vmem:[%s3 + $0x174] sm:$0xf]
  %v159 = vld [vmem:[%s3 + $0x178] sm:$0xf]
  %v160 = vld [vmem:[%s3 + $0x17c] sm:$0xf]
  %v161 = vld [vmem:[%s3 + $0x180] sm:$0xf]
  %v162 = vld [vmem:[%s3 + $0x184] sm:$0xf]
  %v163 = vld [vmem:[%s3 + $0x188] sm:$0xf]
  %v164 = vld [vmem:[%s3 + $0x18c] sm:$0xf]
  %v165 = vld [vmem:[%s3 + $0x190] sm:$0xf]
  %v166 = vld [vmem:[%s3 + $0x194] sm:$0xf]
  %v167 = vld [vmem:[%s3 + $0x198] sm:$0xf]
  %v168 = vld [vmem:[%s3 + $0x19c] sm:$0xf]
  %v169 = vld [vmem:[%s3 + $0x1a0] sm:$0xf]
  %v170 = vld [vmem:[%s3 + $0x1a4] sm:$0xf]
  %v171 = vld [vmem:[%s3 + $0x1a8] sm:$0xf]
  %v172 = vld [vmem:[%s3 + $0x1ac] sm:$0xf]
  %v173 = vld [vmem:[%s3 + $0x1b0] sm:$0xf]
  %v174 = vld [vmem:[%s3 + $0x1b4] sm:$0xf]
  %v175 = vld [vmem:[%s3 + $0x1b8] sm:$0xf]
  %v176 = vld [vmem:[%s3 + $0x1bc] sm:$0xf]
  %v177 = vld [vmem:[%s3 + $0x1c0] sm:$0xf]
  %v178 = vld [vmem:[%s3 + $0x1c4] sm:$0xf]
  %v179 = vld [vmem:[%s3 + $0x1c8] sm:$0xf]
  %v180 = vld [vmem:[%s3 + $0x1cc] sm:$0xf]
  %v181 = vld [vmem:[%s3 + $0x1d0] sm:$0xf]
  %v182 = vld [vmem:[%s3 + $0x1d4] sm:$0xf]
  %v183 = vld [vmem:[%s3 + $0x1d8] sm:$0xf]
  %v184 = vld [vmem:[%s3 + $0x1dc] sm:$0xf]
  %v185 = vld [vmem:[%s3 + $0x1e0] sm:$0xf]
  %v186 = vld [vmem:[%s3 + $0x1e4] sm:$0xf]
  %v187 = vld [vmem:[%s3 + $0x1e8] sm:$0xf]
  %v188 = vld [vmem:[%s3 + $0x1ec] sm:$0xf]
  %v189 = vld [vmem:[%s3 + $0x1f0] sm:$0xf]
  %v190 = vld [vmem:[%s3 + $0x1f4] sm:$0xf]
  %v191 = vld [vmem:[%s3 + $0x1f8] sm:$0xf]
  %v192 = vld [vmem:[%s3 + $0x1fc] sm:$0xf]
  %v193 = vld [vmem:[%s3 + $0x200] sm:$0xf]
  %v194 = vld [vmem:[%s3 + $0x204] sm:$0xf]
  %v195 = vld [vmem:[%s3 + $0x208] sm:$0xf]
  %v196 = vld [vmem:[%s3 + $0x20c] sm:$0xf]
  %v197 = vld [vmem:[%s3 + $0x210] sm:$0xf]
  %v198 = vld [vmem:[%s3 + $0x214] sm:$0xf]
  %v199 = vld [vmem:[%s3 + $0x218] sm:$0xf]
  %v200 = vld [vmem:[%s3 + $0x21c] sm:$0xf]
  %v201 = vld [vmem:[%s3 + $0x220] sm:$0xf]
  %v202 = vld [vmem:[%s3 + $0x224] sm:$0xf]
  %v203 = vld [vmem:[%s3 + $0x228] sm:$0xf]
  %v204 = vld [vmem:[%s3 + $0x22c] sm:$0xf]
  %v205 = vld [vmem:[%s3 + $0x230] sm:$0xf]
  %v206 = vld [vmem:[%s3 + $0x234] sm:$0xf]
  %v207 = vld [vmem:[%s3 + $0x238] sm:$0xf]
  %v208 = vld [vmem:[%s3 + $0x23c] sm:$0xf]
  %v244 = vunpack.c.l.b16 %v30
  %v245 = vunpack.c.h.b16 %v30
  %v246 = vunpack.c.l.b16 %v31
  %v247 = vunpack.c.h.b16 %v31
  %v248 = vunpack.c.l.b16 %v32
  %v249 = vunpack.c.h.b16 %v32
  %v250 = vunpack.c.l.b16 %v33
  %v251 = vunpack.c.h.b16 %v33
  %v252 = vunpack.c.l.b16 %v34
  %v253 = vunpack.c.l.b16 %v35
  %v254 = vunpack.c.h.b16 %v35
  %v255 = vunpack.c.l.b16 %v36
  %v256 = vunpack.c.h.b16 %v36
  %v257 = vunpack.c.l.b16 %v37
  %v258 = vunpack.c.h.b16 %v37
  %v259 = vunpack.c.l.b16 %v38
  %v260 = vunpack.c.h.b16 %v38
  %v261 = vunpack.c.l.b16 %v39
  %v262 = vunpack.c.l.b16 %v40
  %v263 = vunpack.c.h.b16 %v40
  %v264 = vunpack.c.l.b16 %v41
  %v265 = vunpack.c.h.b16 %v41
  %v266 = vunpack.c.l.b16 %v42
  %v267 = vunpack.c.h.b16 %v42
  %v268 = vunpack.c.l.b16 %v43
  %v269 = vunpack.c.h.b16 %v43
  %v270 = vunpack.c.l.b16 %v44
  %v271 = vunpack.c.l.b16 %v45
  %v272 = vunpack.c.h.b16 %v45
  %v273 = vunpack.c.l.b16 %v46
  %v274 = vunpack.c.h.b16 %v46
  %v275 = vunpack.c.l.b16 %v47
  %v276 = vunpack.c.h.b16 %v47
  %v277 = vunpack.c.l.b16 %v48
  %v278 = vunpack.c.h.b16 %v48
  %v279 = vunpack.c.l.b16 %v49
  %v280 = vunpack.c.l.b16 %v50
  %v281 = vunpack.c.h.b16 %v50
  %v282 = vunpack.c.l.b16 %v51
  %v283 = vunpack.c.h.b16 %v51
  %v284 = vunpack.c.l.b16 %v52
  %v285 = vunpack.c.h.b16 %v52
  %v286 = vunpack.c.l.b16 %v53
  %v287 = vunpack.c.h.b16 %v53
  %v288 = vunpack.c.l.b16 %v54
  %v289 = vunpack.c.l.b16 %v55
  %v290 = vunpack.c.h.b16 %v55
  %v291 = vunpack.c.l.b16 %v56
  %v292 = vunpack.c.h.b16 %v56
  %v293 = vunpack.c.l.b16 %v57
  %v294 = vunpack.c.h.b16 %v57
  %v295 = vunpack.c.l.b16 %v58
  %v296 = vunpack.c.h.b16 %v58
  %v297 = vunpack.c.l.b16 %v59
  %v298 = vunpack.c.l.b16 %v60
  %v299 = vunpack.c.h.b16 %v60
  %v300 = vunpack.c.l.b16 %v61
  %v301 = vunpack.c.h.b16 %v61
  %v302 = vunpack.c.l.b16 %v62
  %v303 = vunpack.c.h.b16 %v62
  %v304 = vunpack.c.l.b16 %v63
  %v305 = vunpack.c.h.b16 %v63
  %v306 = vunpack.c.l.b16 %v64
  %v307 = vpack.c.b16 %v253, %v244
  %v308 = vpack.c.b16 %v254, %v245
  %v309 = vpack.c.b16 %v255, %v246
  %v310 = vpack.c.b16 %v256, %v247
  %v311 = vpack.c.b16 %v257, %v248
  %v312 = vpack.c.b16 %v258, %v249
  %v313 = vpack.c.b16 %v259, %v250
  %v314 = vpack.c.b16 %v260, %v251
  %v315 = vpack.c.b16 %v261, %v252
  %v316 = vpack.c.b16 %v271, %v262
  %v317 = vpack.c.b16 %v272, %v263
  %v318 = vpack.c.b16 %v273, %v264
  %v319 = vpack.c.b16 %v274, %v265
  %v320 = vpack.c.b16 %v275, %v266
  %v321 = vpack.c.b16 %v276, %v267
  %v322 = vpack.c.b16 %v277, %v268
  %v323 = vpack.c.b16 %v278, %v269
  %v324 = vpack.c.b16 %v279, %v270
  %v325 = vpack.c.b16 %v289, %v280
  %v326 = vpack.c.b16 %v290, %v281
  %v327 = vpack.c.b16 %v291, %v282
  %v328 = vpack.c.b16 %v292, %v283
  %v329 = vpack.c.b16 %v293, %v284
  %v330 = vpack.c.b16 %v294, %v285
  %v331 = vpack.c.b16 %v295, %v286
  %v332 = vpack.c.b16 %v296, %v287
  %v333 = vpack.c.b16 %v297, %v288
  %v334 = vpack.c.b16 %v298, %v298
  %v335 = vpack.c.b16 %v299, %v299
  %v336 = vpack.c.b16 %v300, %v300
  %v337 = vpack.c.b16 %v301, %v301
  %v338 = vpack.c.b16 %v302, %v302
  %v339 = vpack.c.b16 %v303, %v303
  %v340 = vpack.c.b16 %v304, %v304
  %v341 = vpack.c.b16 %v305, %v305
  %v342 = vpack.c.b16 %v306, %v306
  %v523 = vunpack.c.l.b16 %v65
  %v524 = vunpack.c.l.b16 %v66
  %v525 = vunpack.c.l.b16 %v67
  %v526 = vunpack.c.l.b16 %v68
  %v527 = vunpack.c.l.b16 %v69
  %v528 = vunpack.c.l.b16 %v70
  %v529 = vunpack.c.l.b16 %v71
  %v530 = vunpack.c.l.b16 %v72
  %v531 = vunpack.c.l.b16 %v73
  %v532 = vunpack.c.l.b16 %v74
  %v533 = vunpack.c.l.b16 %v75
  %v534 = vunpack.c.l.b16 %v76
  %v535 = vunpack.c.l.b16 %v77
  %v536 = vunpack.c.l.b16 %v78
  %v537 = vunpack.c.l.b16 %v79
  %v538 = vunpack.c.l.b16 %v80
  %v539 = vunpack.c.l.b16 %v81
  %v540 = vunpack.c.l.b16 %v82
  %v541 = vunpack.c.l.b16 %v83
  %v542 = vunpack.c.l.b16 %v84
  %v543 = vunpack.c.l.b16 %v85
  %v544 = vunpack.c.l.b16 %v86
  %v545 = vunpack.c.l.b16 %v87
  %v546 = vunpack.c.l.b16 %v88
  %v547 = vunpack.c.l.b16 %v89
  %v548 = vunpack.c.l.b16 %v90
  %v549 = vunpack.c.l.b16 %v91
  %v550 = vunpack.c.l.b16 %v92
  %v551 = vunpack.c.l.b16 %v93
  %v552 = vunpack.c.l.b16 %v94
  %v553 = vunpack.c.l.b16 %v95
  %v554 = vunpack.c.l.b16 %v96
  %v555 = vunpack.c.l.b16 %v97
  %v556 = vunpack.c.l.b16 %v98
  %v557 = vunpack.c.l.b16 %v99
  %v558 = vunpack.c.l.b16 %v100
  %v559 = vunpack.c.l.b16 %v101
  %v560 = vunpack.c.l.b16 %v102
  %v561 = vunpack.c.l.b16 %v103
  %v562 = vunpack.c.l.b16 %v104
  %v563 = vunpack.c.l.b16 %v105
  %v564 = vunpack.c.l.b16 %v106
  %v565 = vunpack.c.l.b16 %v107
  %v566 = vunpack.c.l.b16 %v108
  %v567 = vunpack.c.l.b16 %v109
  %v568 = vunpack.c.l.b16 %v110
  %v569 = vunpack.c.l.b16 %v111
  %v570 = vunpack.c.l.b16 %v112
  %v571 = vunpack.c.l.b16 %v113
  %v572 = vunpack.c.l.b16 %v114
  %v573 = vunpack.c.l.b16 %v115
  %v574 = vunpack.c.l.b16 %v116
  %v575 = vunpack.c.l.b16 %v117
  %v576 = vunpack.c.l.b16 %v118
  %v577 = vunpack.c.l.b16 %v119
  %v578 = vunpack.c.l.b16 %v120
  %v579 = vunpack.c.l.b16 %v121
  %v580 = vunpack.c.l.b16 %v122
  %v581 = vunpack.c.l.b16 %v123
  %v582 = vunpack.c.l.b16 %v124
  %v583 = vunpack.c.l.b16 %v125
  %v584 = vunpack.c.l.b16 %v126
  %v585 = vunpack.c.l.b16 %v127
  %v586 = vunpack.c.l.b16 %v128
  %v587 = vunpack.c.l.b16 %v129
  %v588 = vunpack.c.l.b16 %v130
  %v589 = vunpack.c.l.b16 %v131
  %v590 = vunpack.c.l.b16 %v132
  %v591 = vunpack.c.l.b16 %v133
  %v592 = vunpack.c.l.b16 %v134
  %v593 = vunpack.c.l.b16 %v135
  %v594 = vunpack.c.l.b16 %v136
  %v595 = vunpack.c.l.b16 %v137
  %v596 = vunpack.c.l.b16 %v138
  %v597 = vunpack.c.l.b16 %v139
  %v598 = vunpack.c.l.b16 %v140
  %v599 = vunpack.c.l.b16 %v141
  %v600 = vunpack.c.l.b16 %v142
  %v601 = vunpack.c.l.b16 %v143
  %v602 = vunpack.c.l.b16 %v144
  %v603 = vunpack.c.l.b16 %v145
  %v604 = vunpack.c.l.b16 %v146
  %v605 = vunpack.c.l.b16 %v147
  %v606 = vunpack.c.l.b16 %v148
  %v607 = vunpack.c.l.b16 %v149
  %v608 = vunpack.c.l.b16 %v150
  %v609 = vunpack.c.l.b16 %v151
  %v610 = vunpack.c.l.b16 %v152
  %v611 = vunpack.c.l.b16 %v153
  %v612 = vunpack.c.l.b16 %v154
  %v613 = vunpack.c.l.b16 %v155
  %v614 = vunpack.c.l.b16 %v156
  %v615 = vunpack.c.l.b16 %v157
  %v616 = vunpack.c.l.b16 %v158
  %v617 = vunpack.c.l.b16 %v159
  %v618 = vunpack.c.l.b16 %v160
  %v619 = vunpack.c.l.b16 %v161
  %v620 = vunpack.c.l.b16 %v162
  %v621 = vunpack.c.l.b16 %v163
  %v622 = vunpack.c.l.b16 %v164
  %v623 = vunpack.c.l.b16 %v165
  %v624 = vunpack.c.l.b16 %v166
  %v625 = vunpack.c.l.b16 %v167
  %v626 = vunpack.c.l.b16 %v168
  %v627 = vunpack.c.l.b16 %v169
  %v628 = vunpack.c.l.b16 %v170
  %v629 = vunpack.c.l.b16 %v171
  %v630 = vunpack.c.l.b16 %v172
  %v631 = vunpack.c.l.b16 %v173
  %v632 = vunpack.c.l.b16 %v174
  %v633 = vunpack.c.l.b16 %v175
  %v634 = vunpack.c.l.b16 %v176
  %v635 = vunpack.c.l.b16 %v177
  %v636 = vunpack.c.l.b16 %v178
  %v637 = vunpack.c.l.b16 %v179
  %v638 = vunpack.c.l.b16 %v180
  %v639 = vunpack.c.l.b16 %v181
  %v640 = vunpack.c.l.b16 %v182
  %v641 = vunpack.c.l.b16 %v183
  %v642 = vunpack.c.l.b16 %v184
  %v643 = vunpack.c.l.b16 %v185
  %v644 = vunpack.c.l.b16 %v186
  %v645 = vunpack.c.l.b16 %v187
  %v646 = vunpack.c.l.b16 %v188
  %v647 = vunpack.c.l.b16 %v189
  %v648 = vunpack.c.l.b16 %v190
  %v649 = vunpack.c.l.b16 %v191
  %v650 = vunpack.c.l.b16 %v192
  %v651 = vunpack.c.l.b16 %v193
  %v652 = vunpack.c.l.b16 %v194
  %v653 = vunpack.c.l.b16 %v195
  %v654 = vunpack.c.l.b16 %v196
  %v655 = vunpack.c.l.b16 %v197
  %v656 = vunpack.c.l.b16 %v198
  %v657 = vunpack.c.l.b16 %v199
  %v658 = vunpack.c.l.b16 %v200
  %v659 = vunpack.c.l.b16 %v201
  %v660 = vunpack.c.l.b16 %v202
  %v661 = vunpack.c.l.b16 %v203
  %v662 = vunpack.c.l.b16 %v204
  %v663 = vunpack.c.l.b16 %v205
  %v664 = vunpack.c.l.b16 %v206
  %v665 = vunpack.c.l.b16 %v207
  %v666 = vunpack.c.l.b16 %v208
  %v667 = vpack.c.b16 %v524, %v523
  %v668 = vpack.c.b16 %v526, %v525
  %v669 = vpack.c.b16 %v528, %v527
  %v670 = vpack.c.b16 %v530, %v529
  %v671 = vpack.c.b16 %v532, %v531
  %v672 = vpack.c.b16 %v534, %v533
  %v673 = vpack.c.b16 %v536, %v535
  %v674 = vpack.c.b16 %v538, %v537
  %v675 = vpack.c.b16 %v540, %v539
  %v676 = vpack.c.b16 %v542, %v541
  %v677 = vpack.c.b16 %v544, %v543
  %v678 = vpack.c.b16 %v546, %v545
  %v679 = vpack.c.b16 %v548, %v547
  %v680 = vpack.c.b16 %v550, %v549
  %v681 = vpack.c.b16 %v552, %v551
  %v682 = vpack.c.b16 %v554, %v553
  %v683 = vpack.c.b16 %v556, %v555
  %v684 = vpack.c.b16 %v558, %v557
  %v685 = vpack.c.b16 %v560, %v559
  %v686 = vpack.c.b16 %v562, %v561
  %v687 = vpack.c.b16 %v564, %v563
  %v688 = vpack.c.b16 %v566, %v565
  %v689 = vpack.c.b16 %v568, %v567
  %v690 = vpack.c.b16 %v570, %v569
  %v691 = vpack.c.b16 %v572, %v571
  %v692 = vpack.c.b16 %v574, %v573
  %v693 = vpack.c.b16 %v576, %v575
  %v694 = vpack.c.b16 %v578, %v577
  %v695 = vpack.c.b16 %v580, %v579
  %v696 = vpack.c.b16 %v582, %v581
  %v697 = vpack.c.b16 %v584, %v583
  %v698 = vpack.c.b16 %v586, %v585
  %v699 = vpack.c.b16 %v588, %v587
  %v700 = vpack.c.b16 %v590, %v589
  %v701 = vpack.c.b16 %v592, %v591
  %v702 = vpack.c.b16 %v594, %v593
  %v703 = vpack.c.b16 %v596, %v595
  %v704 = vpack.c.b16 %v598, %v597
  %v705 = vpack.c.b16 %v600, %v599
  %v706 = vpack.c.b16 %v602, %v601
  %v707 = vpack.c.b16 %v604, %v603
  %v708 = vpack.c.b16 %v606, %v605
  %v709 = vpack.c.b16 %v608, %v607
  %v710 = vpack.c.b16 %v610, %v609
  %v711 = vpack.c.b16 %v612, %v611
  %v712 = vpack.c.b16 %v614, %v613
  %v713 = vpack.c.b16 %v616, %v615
  %v714 = vpack.c.b16 %v618, %v617
  %v715 = vpack.c.b16 %v620, %v619
  %v716 = vpack.c.b16 %v622, %v621
  %v717 = vpack.c.b16 %v624, %v623
  %v718 = vpack.c.b16 %v626, %v625
  %v719 = vpack.c.b16 %v628, %v627
  %v720 = vpack.c.b16 %v630, %v629
  %v721 = vpack.c.b16 %v632, %v631
  %v722 = vpack.c.b16 %v634, %v633
  %v723 = vpack.c.b16 %v636, %v635
  %v724 = vpack.c.b16 %v638, %v637
  %v725 = vpack.c.b16 %v640, %v639
  %v726 = vpack.c.b16 %v642, %v641
  %v727 = vpack.c.b16 %v644, %v643
  %v728 = vpack.c.b16 %v646, %v645
  %v729 = vpack.c.b16 %v648, %v647
  %v730 = vpack.c.b16 %v650, %v649
  %v731 = vpack.c.b16 %v652, %v651
  %v732 = vpack.c.b16 %v654, %v653
  %v733 = vpack.c.b16 %v656, %v655
  %v734 = vpack.c.b16 %v658, %v657
  %v735 = vpack.c.b16 %v660, %v659
  %v736 = vpack.c.b16 %v662, %v661
  %v737 = vpack.c.b16 %v664, %v663
  %v738 = vpack.c.b16 %v666, %v665
  %811 = vmatprep.subr.bf16.mxu0 0
  %812 = vmatpush1.bf16.msra.mxu0 %v667
  %813 = vmatprep.subr.bf16.mxu0 0
  %814 = vmatpush1.bf16.msra.mxu0 %v668
  %815 = vmatprep.subr.bf16.mxu0 0
  %816 = vmatpush1.bf16.msra.mxu0 %v669
  %817 = vmatprep.subr.bf16.mxu0 0
  %818 = vmatpush1.bf16.msra.mxu0 %v670
  %819 = vmatprep.subr.bf16.mxu0 0
  %820 = vmatpush1.bf16.msra.mxu0 %v671
  %821 = vmatprep.subr.bf16.mxu0 0
  %822 = vmatpush1.bf16.msra.mxu0 %v672
  %823 = vmatprep.subr.bf16.mxu0 0
  %824 = vmatpush1.bf16.msra.mxu0 %v673
  %825 = vmatprep.subr.bf16.mxu0 0
  %826 = vmatpush1.bf16.msra.mxu0 %v674
  %827 = vmatprep.subr.bf16.mxu0 0
  %828 = vmatpush1.bf16.msra.mxu0 %v675
  %829 = vmatprep.subr.bf16.mxu0 0
  %830 = vmatpush1.bf16.msra.mxu0 %v676
  %831 = vmatprep.subr.bf16.mxu0 0
  %832 = vmatpush1.bf16.msra.mxu0 %v677
  %833 = vmatprep.subr.bf16.mxu0 0
  %834 = vmatpush1.bf16.msra.mxu0 %v678
  %835 = vmatprep.subr.bf16.mxu0 0
  %836 = vmatpush1.bf16.msra.mxu0 %v679
  %837 = vmatprep.subr.bf16.mxu0 0
  %838 = vmatpush1.bf16.msra.mxu0 %v680
  %839 = vmatprep.subr.bf16.mxu0 0
  %840 = vmatpush1.bf16.msra.mxu0 %v681
  %841 = vmatprep.subr.bf16.mxu0 0
  %842 = vmatpush1.bf16.msra.mxu0 %v682
  %843 = vmatprep.mubr.bf16.mxu0 %v308
  %844 = vmatmul.mubr.bf16.gmra.mrb[0].mxu0 %v307
  %v845 = vpop.f32.mrb[0].mxu0
  %v846 = vadd.f32 0.0, %v845
  %v847 = vpop.f32.mrb[0].mxu0
  %v848 = vpop.f32.mrb[0].mxu0
  %v849 = vadd.f32 0.0, %v848
  %v850 = vpop.f32.mrb[0].mxu0
  %851 = vmatprep.mubr.bf16.mxu0 %v317
  %852 = vmatmul.mubr.bf16.gmra.mrb[0].mxu0 %v316
  %v853 = vpop.f32.mrb[0].mxu0
  %v854 = vadd.f32 0.0, %v853
  %v855 = vpop.f32.mrb[0].mxu0
  %v856 = vpop.f32.mrb[0].mxu0
  %v857 = vadd.f32 0.0, %v856
  %v858 = vpop.f32.mrb[0].mxu0
  %859 = vmatprep.mubr.bf16.mxu0 %v326
  %860 = vmatmul.mubr.bf16.gmra.mrb[0].mxu0 %v325
  %v861 = vpop.f32.mrb[0].mxu0
  %v862 = vadd.f32 0.0, %v861
  %v863 = vpop.f32.mrb[0].mxu0
  %v864 = vpop.f32.mrb[0].mxu0
  %v865 = vadd.f32 0.0, %v864
  %v866 = vpop.f32.mrb[0].mxu0
  %867 = vmatprep.mubr.bf16.mxu0 %v335
  %868 = vmatmul.mubr.bf16.gmra.mrb[0].mxu0 %v334
  %v869 = vpop.f32.mrb[0].mxu0
  %v870 = vadd.f32 0.0, %v869
  %v871 = vpop.f32.mrb[0].mxu0
  %v872 = vpop.f32.mrb[0].mxu0
  %v873 = vpop.f32.mrb[0].mxu0
  %874 = vdwg.mxu0
  %875 = vmatprep.subr.bf16.mxu0 0
  %876 = vmatpush1.bf16.msra.mxu0 %v683
  %877 = vmatprep.subr.bf16.mxu0 0
  %878 = vmatpush1.bf16.msra.mxu0 %v684
  %879 = vmatprep.subr.bf16.mxu0 0
  %880 = vmatpush1.bf16.msra.mxu0 %v685
  %881 = vmatprep.subr.bf16.mxu0 0
  %882 = vmatpush1.bf16.msra.mxu0 %v686
  %883 = vmatprep.subr.bf16.mxu0 0
  %884 = vmatpush1.bf16.msra.mxu0 %v687
  %885 = vmatprep.subr.bf16.mxu0 0
  %886 = vmatpush1.bf16.msra.mxu0 %v688
  %887 = vmatprep.subr.bf16.mxu0 0
  %888 = vmatpush1.bf16.msra.mxu0 %v689
  %889 = vmatprep.subr.bf16.mxu0 0
  %890 = vmatpush1.bf16.msra.mxu0 %v690
  %891 = vmatprep.subr.bf16.mxu0 0
  %892 = vmatpush1.bf16.msra.mxu0 %v691
  %893 = vmatprep.subr.bf16.mxu0 0
  %894 = vmatpush1.bf16.msra.mxu0 %v692
  %895 = vmatprep.subr.bf16.mxu0 0
  %896 = vmatpush1.bf16.msra.mxu0 %v693
  %897 = vmatprep.subr.bf16.mxu0 0
  %898 = vmatpush1.bf16.msra.mxu0 %v694
  %899 = vmatprep.subr.bf16.mxu0 0
  %900 = vmatpush1.bf16.msra.mxu0 %v695
  %901 = vmatprep.subr.bf16.mxu0 0
  %902 = vmatpush1.bf16.msra.mxu0 %v696
  %903 = vmatprep.subr.bf16.mxu0 0
  %904 = vmatpush1.bf16.msra.mxu0 %v697
  %905 = vmatprep.subr.bf16.mxu0 0
  %906 = vmatpush1.bf16.msra.mxu0 %v698
  %907 = vmatprep.mubr.bf16.mxu0 %v310
  %908 = vmatmul.mubr.bf16.gmra.mrb[0].mxu0 %v309
  %v909 = vpop.f32.mrb[0].mxu0
  %v910 = vadd.f32 %v846, %v909
  %v911 = vpop.f32.mrb[0].mxu0
  %v912 = vpop.f32.mrb[0].mxu0
  %v913 = vadd.f32 %v849, %v912
  %v914 = vpop.f32.mrb[0].mxu0
  %915 = vmatprep.mubr.bf16.mxu0 %v319
  %916 = vmatmul.mubr.bf16.gmra.mrb[0].mxu0 %v318
  %v917 = vpop.f32.mrb[0].mxu0
  %v918 = vadd.f32 %v854, %v917
  %v919 = vpop.f32.mrb[0].mxu0
  %v920 = vpop.f32.mrb[0].mxu0
  %v921 = vadd.f32 %v857, %v920
  %v922 = vpop.f32.mrb[0].mxu0
  %923 = vmatprep.mubr.bf16.mxu0 %v328
  %924 = vmatmul.mubr.bf16.gmra.mrb[0].mxu0 %v327
  %v925 = vpop.f32.mrb[0].mxu0
  %v926 = vadd.f32 %v862, %v925
  %v927 = vpop.f32.mrb[0].mxu0
  %v928 = vpop.f32.mrb[0].mxu0
  %v929 = vadd.f32 %v865, %v928
  %v930 = vpop.f32.mrb[0].mxu0
  %931 = vmatprep.mubr.bf16.mxu0 %v337
  %932 = vmatmul.mubr.bf16.gmra.mrb[0].mxu0 %v336
  %v933 = vpop.f32.mrb[0].mxu0
  %v934 = vadd.f32 %v870, %v933
  %v935 = vpop.f32.mrb[0].mxu0
  %v936 = vpop.f32.mrb[0].mxu0
  %v937 = vpop.f32.mrb[0].mxu0
  %938 = vdwg.mxu0
  %939 = vmatprep.subr.bf16.mxu0 0
  %940 = vmatpush1.bf16.msra.mxu0 %v699
  %941 = vmatprep.subr.bf16.mxu0 0
  %942 = vmatpush1.bf16.msra.mxu0 %v700
  %943 = vmatprep.subr.bf16.mxu0 0
  %944 = vmatpush1.bf16.msra.mxu0 %v701
  %945 = vmatprep.subr.bf16.mxu0 0
  %946 = vmatpush1.bf16.msra.mxu0 %v702
  %947 = vmatprep.subr.bf16.mxu0 0
  %948 = vmatpush1.bf16.msra.mxu0 %v703
  %949 = vmatprep.subr.bf16.mxu0 0
  %950 = vmatpush1.bf16.msra.mxu0 %v704
  %951 = vmatprep.subr.bf16.mxu0 0
  %952 = vmatpush1.bf16.msra.mxu0 %v705
  %953 = vmatprep.subr.bf16.mxu0 0
  %954 = vmatpush1.bf16.msra.mxu0 %v706
  %955 = vmatprep.subr.bf16.mxu0 0
  %956 = vmatpush1.bf16.msra.mxu0 %v707
  %957 = vmatprep.subr.bf16.mxu0 0
  %958 = vmatpush1.bf16.msra.mxu0 %v708
  %959 = vmatprep.subr.bf16.mxu0 0
  %960 = vmatpush1.bf16.msra.mxu0 %v709
  %961 = vmatprep.subr.bf16.mxu0 0
  %962 = vmatpush1.bf16.msra.mxu0 %v710
  %963 = vmatprep.subr.bf16.mxu0 0
  %964 = vmatpush1.bf16.msra.mxu0 %v711
  %965 = vmatprep.subr.bf16.mxu0 0
  %966 = vmatpush1.bf16.msra.mxu0 %v712
  %967 = vmatprep.subr.bf16.mxu0 0
  %968 = vmatpush1.bf16.msra.mxu0 %v713
  %969 = vmatprep.subr.bf16.mxu0 0
  %970 = vmatpush1.bf16.msra.mxu0 %v714
  %971 = vmatprep.mubr.bf16.mxu0 %v312
  %972 = vmatmul.mubr.bf16.gmra.mrb[0].mxu0 %v311
  %v973 = vpop.f32.mrb[0].mxu0
  %v974 = vadd.f32 %v910, %v973
  %v975 = vpop.f32.mrb[0].mxu0
  %v976 = vpop.f32.mrb[0].mxu0
  %v977 = vadd.f32 %v913, %v976
  %v978 = vpop.f32.mrb[0].mxu0
  %979 = vmatprep.mubr.bf16.mxu0 %v321
  %980 = vmatmul.mubr.bf16.gmra.mrb[0].mxu0 %v320
  %v981 = vpop.f32.mrb[0].mxu0
  %v982 = vadd.f32 %v918, %v981
  %v983 = vpop.f32.mrb[0].mxu0
  %v984 = vpop.f32.mrb[0].mxu0
  %v985 = vadd.f32 %v921, %v984
  %v986 = vpop.f32.mrb[0].mxu0
  %987 = vmatprep.mubr.bf16.mxu0 %v330
  %988 = vmatmul.mubr.bf16.gmra.mrb[0].mxu0 %v329
  %v989 = vpop.f32.mrb[0].mxu0
  %v990 = vadd.f32 %v926, %v989
  %v991 = vpop.f32.mrb[0].mxu0
  %v992 = vpop.f32.mrb[0].mxu0
  %v993 = vadd.f32 %v929, %v992
  %v994 = vpop.f32.mrb[0].mxu0
  %995 = vmatprep.mubr.bf16.mxu0 %v339
  %996 = vmatmul.mubr.bf16.gmra.mrb[0].mxu0 %v338
  %v997 = vpop.f32.mrb[0].mxu0
  %v998 = vadd.f32 %v934, %v997
  %v999 = vpop.f32.mrb[0].mxu0
  %v1000 = vpop.f32.mrb[0].mxu0
  %v1001 = vpop.f32.mrb[0].mxu0
  %1002 = vdwg.mxu0
  %1003 = vmatprep.subr.bf16.mxu0 0
  %1004 = vmatpush1.bf16.msra.mxu0 %v715
  %1005 = vmatprep.subr.bf16.mxu0 0
  %1006 = vmatpush1.bf16.msra.mxu0 %v716
  %1007 = vmatprep.subr.bf16.mxu0 0
  %1008 = vmatpush1.bf16.msra.mxu0 %v717
  %1009 = vmatprep.subr.bf16.mxu0 0
  %1010 = vmatpush1.bf16.msra.mxu0 %v718
  %1011 = vmatprep.subr.bf16.mxu0 0
  %1012 = vmatpush1.bf16.msra.mxu0 %v719
  %1013 = vmatprep.subr.bf16.mxu0 0
  %1014 = vmatpush1.bf16.msra.mxu0 %v720
  %1015 = vmatprep.subr.bf16.mxu0 0
  %1016 = vmatpush1.bf16.msra.mxu0 %v721
  %1017 = vmatprep.subr.bf16.mxu0 0
  %1018 = vmatpush1.bf16.msra.mxu0 %v722
  %1019 = vmatprep.subr.bf16.mxu0 0
  %1020 = vmatpush1.bf16.msra.mxu0 %v723
  %1021 = vmatprep.subr.bf16.mxu0 0
  %1022 = vmatpush1.bf16.msra.mxu0 %v724
  %1023 = vmatprep.subr.bf16.mxu0 0
  %1024 = vmatpush1.bf16.msra.mxu0 %v725
  %1025 = vmatprep.subr.bf16.mxu0 0
  %1026 = vmatpush1.bf16.msra.mxu0 %v726
  %1027 = vmatprep.subr.bf16.mxu0 0
  %1028 = vmatpush1.bf16.msra.mxu0 %v727
  %1029 = vmatprep.subr.bf16.mxu0 0
  %1030 = vmatpush1.bf16.msra.mxu0 %v728
  %1031 = vmatprep.subr.bf16.mxu0 0
  %1032 = vmatpush1.bf16.msra.mxu0 %v729
  %1033 = vmatprep.subr.bf16.mxu0 0
  %1034 = vmatpush1.bf16.msra.mxu0 %v730
  %1035 = vmatprep.mubr.bf16.mxu0 %v314
  %1036 = vmatmul.mubr.bf16.gmra.mrb[0].mxu0 %v313
  %v1037 = vpop.f32.mrb[0].mxu0
  %v1038 = vadd.f32 %v974, %v1037
  %v1039 = vpop.f32.mrb[0].mxu0
  %v1040 = vpop.f32.mrb[0].mxu0
  %v1041 = vadd.f32 %v977, %v1040
  %v1042 = vpop.f32.mrb[0].mxu0
  %1043 = vmatprep.mubr.bf16.mxu0 %v323
  %1044 = vmatmul.mubr.bf16.gmra.mrb[0].mxu0 %v322
  %v1045 = vpop.f32.mrb[0].mxu0
  %v1046 = vadd.f32 %v982, %v1045
  %v1047 = vpop.f32.mrb[0].mxu0
  %v1048 = vpop.f32.mrb[0].mxu0
  %v1049 = vadd.f32 %v985, %v1048
  %v1050 = vpop.f32.mrb[0].mxu0
  %1051 = vmatprep.mubr.bf16.mxu0 %v332
  %1052 = vmatmul.mubr.bf16.gmra.mrb[0].mxu0 %v331
  %v1053 = vpop.f32.mrb[0].mxu0
  %v1054 = vadd.f32 %v990, %v1053
  %v1055 = vpop.f32.mrb[0].mxu0
  %v1056 = vpop.f32.mrb[0].mxu0
  %v1057 = vadd.f32 %v993, %v1056
  %v1058 = vpop.f32.mrb[0].mxu0
  %1059 = vmatprep.mubr.bf16.mxu0 %v341
  %1060 = vmatmul.mubr.bf16.gmra.mrb[0].mxu0 %v340
  %v1061 = vpop.f32.mrb[0].mxu0
  %v1062 = vadd.f32 %v998, %v1061
  %v1063 = vpop.f32.mrb[0].mxu0
  %v1064 = vpop.f32.mrb[0].mxu0
  %v1065 = vpop.f32.mrb[0].mxu0
  %1066 = vdwg.mxu0
  %1067 = vmatprep.subr.bf16.mxu0 0
  %1068 = vmatpush1.bf16.msra.mxu0 %v731
  %1069 = vmatprep.subr.bf16.mxu0 0
  %1070 = vmatpush1.bf16.msra.mxu0 %v732
  %1071 = vmatprep.subr.bf16.mxu0 0
  %1072 = vmatpush1.bf16.msra.mxu0 %v733
  %1073 = vmatprep.subr.bf16.mxu0 0
  %1074 = vmatpush1.bf16.msra.mxu0 %v734
  %1075 = vmatprep.subr.bf16.mxu0 0
  %1076 = vmatpush1.bf16.msra.mxu0 %v735
  %1077 = vmatprep.subr.bf16.mxu0 0
  %1078 = vmatpush1.bf16.msra.mxu0 %v736
  %1079 = vmatprep.subr.bf16.mxu0 0
  %1080 = vmatpush1.bf16.msra.mxu0 %v737
  %1081 = vmatprep.subr.bf16.mxu0 0
  %1082 = vmatpush1.bf16.msra.mxu0 %v738
  %1083 = vmatprep.subr.bf16.mxu0 0
  %1084 = vmatpush1.bf16.msra.mxu0 0
  %1085 = vmatprep.subr.bf16.mxu0 0
  %1086 = vmatpush1.bf16.msra.mxu0 0
  %1087 = vmatprep.subr.bf16.mxu0 0
  %1088 = vmatpush1.bf16.msra.mxu0 0
  %1089 = vmatprep.subr.bf16.mxu0 0
  %1090 = vmatpush1.bf16.msra.mxu0 0
  %1091 = vmatprep.subr.bf16.mxu0 0
  %1092 = vmatpush1.bf16.msra.mxu0 0
  %1093 = vmatprep.subr.bf16.mxu0 0
  %1094 = vmatpush1.bf16.msra.mxu0 0
  %1095 = vmatprep.subr.bf16.mxu0 0
  %1096 = vmatpush1.bf16.msra.mxu0 0
  %1097 = vmatprep.subr.bf16.mxu0 0
  %1098 = vmatpush1.bf16.msra.mxu0 0
  %1099 = vmatprep.mubr.bf16.mxu0 0
  %1100 = vmatmul.mubr.bf16.gmra.mrb[0].mxu0 %v315
  %v1101 = vpop.f32.mrb[0].mxu0
  %v1102 = vadd.f32 %v1038, %v1101
  %v1103 = vpop.f32.mrb[0].mxu0
  %v1104 = vpop.f32.mrb[0].mxu0
  %v1105 = vadd.f32 %v1041, %v1104
  %v1106 = vpop.f32.mrb[0].mxu0
  %1107 = vmatprep.mubr.bf16.mxu0 0
  %1108 = vmatmul.mubr.bf16.gmra.mrb[0].mxu0 %v324
  %v1109 = vpop.f32.mrb[0].mxu0
  %v1110 = vadd.f32 %v1046, %v1109
  %v1111 = vpop.f32.mrb[0].mxu0
  %v1112 = vpop.f32.mrb[0].mxu0
  %v1113 = vadd.f32 %v1049, %v1112
  %v1114 = vpop.f32.mrb[0].mxu0
  %1115 = vmatprep.mubr.bf16.mxu0 0
  %1116 = vmatmul.mubr.bf16.gmra.mrb[0].mxu0 %v333
  %v1117 = vpop.f32.mrb[0].mxu0
  %v1118 = vadd.f32 %v1054, %v1117
  %v1119 = vpop.f32.mrb[0].mxu0
  %v1120 = vpop.f32.mrb[0].mxu0
  %v1121 = vadd.f32 %v1057, %v1120
  %v1122 = vpop.f32.mrb[0].mxu0
  %1123 = vmatprep.mubr.bf16.mxu0 0
  %1124 = vmatmul.mubr.bf16.gmra.mrb[0].mxu0 %v342
  %v1125 = vpop.f32.mrb[0].mxu0
  %v1126 = vadd.f32 %v1062, %v1125
  %v1127 = vpop.f32.mrb[0].mxu0
  %v1128 = vpop.f32.mrb[0].mxu0
  %v1129 = vpop.f32.mrb[0].mxu0
  %1130 = vdwg.mxu0
  %v1131 = vld [vmem:[%s1] sm:$0xff]
  %v1132 = vld [vmem:[%s1 + $0x8] sm:$0xff]
  %v1133 = vld [vmem:[%s1 + $0x10] sm:$0xff]
  %v1134 = vld [vmem:[%s1 + $0x18] sm:$0xff]
  %v1135 = vld [vmem:[%s1 + $0x20] sm:$0xff]
  %v1136 = vld [vmem:[%s1 + $0x28] sm:$0xff]
  %v1137 = vld [vmem:[%s1 + $0x30] sm:$0x1]
  %v1138 = vadd.f32 %v1131, %v1102
  %v1139 = vadd.f32 %v1132, %v1105
  %v1140 = vadd.f32 %v1133, %v1110
  %v1141 = vadd.f32 %v1134, %v1113
  %v1142 = vadd.f32 %v1135, %v1118
  %v1143 = vadd.f32 %v1136, %v1121
  %v1144 = vadd.f32 %v1137, %v1126
  %v1145 = vld [vmem:[%s0] sm:$0xff]
  %v1146 = vld [vmem:[%s0 + $0x8] sm:$0xff]
  %v1147 = vld [vmem:[%s0 + $0x10] sm:$0xff]
  %v1148 = vld [vmem:[%s0 + $0x18] sm:$0xff]
  %v1149 = vld [vmem:[%s0 + $0x20] sm:$0xff]
  %v1150 = vld [vmem:[%s0 + $0x28] sm:$0xff]
  %v1151 = vld [vmem:[%s0 + $0x30] sm:$0xff]
  %v1152 = vld [vmem:[%s0 + $0x38] sm:$0xff]
  %v1153 = vld [vmem:[%s0 + $0x40] sm:$0xff]
  %v1154 = vld [vmem:[%s0 + $0x48] sm:$0xff]
  %v1155 = vld [vmem:[%s0 + $0x50] sm:$0xff]
  %v1156 = vld [vmem:[%s0 + $0x58] sm:$0xff]
  %v1157 = vld [vmem:[%s0 + $0x60] sm:$0xff]
  %v1158 = vld [vmem:[%s0 + $0x68] sm:$0xff]
  %v1159 = vld [vmem:[%s0 + $0x70] sm:$0xff]
  %v1160 = vld [vmem:[%s0 + $0x78] sm:$0xff]
  %v1161 = vld [vmem:[%s0 + $0x80] sm:$0xff]
  %v1162 = vld [vmem:[%s0 + $0x88] sm:$0xff]
  %v1163 = vld [vmem:[%s0 + $0x90] sm:$0xff]
  %v1164 = vld [vmem:[%s0 + $0x98] sm:$0xff]
  %v1165 = vld [vmem:[%s0 + $0xa0] sm:$0xff]
  %v1166 = vld [vmem:[%s0 + $0xa8] sm:$0xff]
  %v1167 = vld [vmem:[%s0 + $0xb0] sm:$0xff]
  %v1168 = vld [vmem:[%s0 + $0xb8] sm:$0xff]
  %v1169 = vld [vmem:[%s0 + $0xc0] sm:$0xff]
  %v1170 = vld [vmem:[%s0 + $0xc8] sm:$0xff]
  %v1171 = vld [vmem:[%s0 + $0xd0] sm:$0xff]
  %v1172 = vld [vmem:[%s0 + $0xd8] sm:$0xff]
  %v1173 = vld [vmem:[%s0 + $0xe0] sm:$0xff]
  %v1174 = vld [vmem:[%s0 + $0xe8] sm:$0xff]
  %v1175 = vld [vmem:[%s0 + $0xf0] sm:$0xff]
  %v1176 = vld [vmem:[%s0 + $0xf8] sm:$0xff]
  %v1177 = vld [vmem:[%s0 + $0x100] sm:$0xff]
  %v1178 = vld [vmem:[%s0 + $0x108] sm:$0xff]
  %v1179 = vld [vmem:[%s0 + $0x110] sm:$0xff]
  %v1180 = vld [vmem:[%s0 + $0x118] sm:$0xff]
  %v1181 = vld [vmem:[%s0 + $0x120] sm:$0xff]
  %v1182 = vld [vmem:[%s0 + $0x128] sm:$0xff]
  %v1183 = vld [vmem:[%s0 + $0x130] sm:$0xff]
  %v1184 = vld [vmem:[%s0 + $0x138] sm:$0xff]
  %v1185 = vld [vmem:[%s0 + $0x140] sm:$0xff]
  %v1186 = vld [vmem:[%s0 + $0x148] sm:$0xff]
  %v1187 = vld [vmem:[%s0 + $0x150] sm:$0xff]
  %v1188 = vld [vmem:[%s0 + $0x158] sm:$0xff]
  %v1189 = vld [vmem:[%s0 + $0x160] sm:$0xff]
  %v1190 = vld [vmem:[%s0 + $0x168] sm:$0xff]
  %v1191 = vld [vmem:[%s0 + $0x170] sm:$0xff]
  %v1192 = vld [vmem:[%s0 + $0x178] sm:$0xff]
  %v1193 = vld [vmem:[%s0 + $0x180] sm:$0xff]
  %v1194 = vld [vmem:[%s0 + $0x188] sm:$0xff]
  %v1195 = vld [vmem:[%s0 + $0x190] sm:$0xff]
  %v1196 = vld [vmem:[%s0 + $0x198] sm:$0xff]
  %v1197 = vld [vmem:[%s0 + $0x1a0] sm:$0xff]
  %v1198 = vld [vmem:[%s0 + $0x1a8] sm:$0xff]
  %v1199 = vld [vmem:[%s0 + $0x1b0] sm:$0xff]
  %v1200 = vld [vmem:[%s0 + $0x1b8] sm:$0xff]
  %v1201 = vld [vmem:[%s0 + $0x1c0] sm:$0xff]
  %v1202 = vld [vmem:[%s0 + $0x1c8] sm:$0xff]
  %v1203 = vld [vmem:[%s0 + $0x1d0] sm:$0xff]
  %v1204 = vld [vmem:[%s0 + $0x1d8] sm:$0xff]
  %v1205 = vld [vmem:[%s0 + $0x1e0] sm:$0xff]
  %v1206 = vld [vmem:[%s0 + $0x1e8] sm:$0xff]
  %v1207 = vld [vmem:[%s0 + $0x1f0] sm:$0xff]
  %v1208 = vld [vmem:[%s0 + $0x1f8] sm:$0xff]
  %v1209 = vld [vmem:[%s0 + $0x200] sm:$0xff]
  %v1210 = vld [vmem:[%s0 + $0x208] sm:$0xff]
  %v1211 = vld [vmem:[%s0 + $0x210] sm:$0xff]
  %v1212 = vld [vmem:[%s0 + $0x218] sm:$0xff]
  %v1213 = vld [vmem:[%s0 + $0x220] sm:$0xff]
  %v1214 = vld [vmem:[%s0 + $0x228] sm:$0xff]
  %v1215 = vld [vmem:[%s0 + $0x230] sm:$0xff]
  %v1216 = vld [vmem:[%s0 + $0x238] sm:$0xff]
  %v1217 = vld [vmem:[%s0 + $0x240] sm:$0x1]
  %v1218 = vld [vmem:[%s0 + $0x248] sm:$0x1]
  %v1219 = vld [vmem:[%s0 + $0x250] sm:$0x1]
  %v1220 = vld [vmem:[%s0 + $0x258] sm:$0x1]
  %v1221 = vld [vmem:[%s0 + $0x260] sm:$0x1]
  %v1222 = vld [vmem:[%s0 + $0x268] sm:$0x1]
  %v1223 = vld [vmem:[%s0 + $0x270] sm:$0x1]
  %v1224 = vld [vmem:[%s0 + $0x278] sm:$0x1]
  %v1225 = vld [vmem:[%s0 + $0x280] sm:$0x1]
  %v1226 = vld [vmem:[%s0 + $0x288] sm:$0x1]
  %v1227 = vld [vmem:[%s0 + $0x290] sm:$0x1]
  %v1228 = vld [vmem:[%s0 + $0x298] sm:$0x1]
  %v1229 = vld [vmem:[%s4] sm:$0xff]
  %v1230 = vld [vmem:[%s4 + $0x8] sm:$0xf]
  %v1231 = vld [vmem:[%s6] sm:$0xff]
  %v1232 = vld [vmem:[%s6 + $0x8] sm:$0xf]
  %v1233 = vadd.f32 %v1145, %v1157
  %v1234 = vadd.f32 %v1233, %v1169
  %v1235 = vadd.f32 %v1234, %v1181
  %v1236 = vadd.f32 %v1235, %v1193
  %v1237 = vadd.f32 %v1236, %v1205
  %vm1238 = vcmask 1040384
  %v1239 = vsel %vm1238, %v1217, 0.0
  %v1240 = vadd.f32 %v1237, %v1239
  %v1241 = vrot.slane %v1240, 4
  %v1242 = vadd.f32 %v1240, %v1241
  %v1243 = vrot.slane %v1242, 2
  %v1244 = vadd.f32 %v1242, %v1243
  %v1245 = vrot.slane %v1244, 1
  %v1246 = vadd.f32 %v1244, %v1245
  %v1247 = vadd.f32 %v1146, %v1158
  %v1248 = vadd.f32 %v1247, %v1170
  %v1249 = vadd.f32 %v1248, %v1182
  %v1250 = vadd.f32 %v1249, %v1194
  %v1251 = vadd.f32 %v1250, %v1206
  %v1252 = vsel %vm1238, %v1218, 0.0
  %v1253 = vadd.f32 %v1251, %v1252
  %v1254 = vrot.slane %v1253, 4
  %v1255 = vadd.f32 %v1253, %v1254
  %v1256 = vrot.slane %v1255, 2
  %v1257 = vadd.f32 %v1255, %v1256
  %v1258 = vrot.slane %v1257, 1
  %v1259 = vadd.f32 %v1257, %v1258
  %v1260 = vadd.f32 %v1147, %v1159
  %v1261 = vadd.f32 %v1260, %v1171
  %v1262 = vadd.f32 %v1261, %v1183
  %v1263 = vadd.f32 %v1262, %v1195
  %v1264 = vadd.f32 %v1263, %v1207
  %v1265 = vsel %vm1238, %v1219, 0.0
  %v1266 = vadd.f32 %v1264, %v1265
  %v1267 = vrot.slane %v1266, 4
  %v1268 = vadd.f32 %v1266, %v1267
  %v1269 = vrot.slane %v1268, 2
  %v1270 = vadd.f32 %v1268, %v1269
  %v1271 = vrot.slane %v1270, 1
  %v1272 = vadd.f32 %v1270, %v1271
  %v1273 = vadd.f32 %v1148, %v1160
  %v1274 = vadd.f32 %v1273, %v1172
  %v1275 = vadd.f32 %v1274, %v1184
  %v1276 = vadd.f32 %v1275, %v1196
  %v1277 = vadd.f32 %v1276, %v1208
  %v1278 = vsel %vm1238, %v1220, 0.0
  %v1279 = vadd.f32 %v1277, %v1278
  %v1280 = vrot.slane %v1279, 4
  %v1281 = vadd.f32 %v1279, %v1280
  %v1282 = vrot.slane %v1281, 2
  %v1283 = vadd.f32 %v1281, %v1282
  %v1284 = vrot.slane %v1283, 1
  %v1285 = vadd.f32 %v1283, %v1284
  %v1286 = vadd.f32 %v1149, %v1161
  %v1287 = vadd.f32 %v1286, %v1173
  %v1288 = vadd.f32 %v1287, %v1185
  %v1289 = vadd.f32 %v1288, %v1197
  %v1290 = vadd.f32 %v1289, %v1209
  %v1291 = vsel %vm1238, %v1221, 0.0
  %v1292 = vadd.f32 %v1290, %v1291
  %v1293 = vrot.slane %v1292, 4
  %v1294 = vadd.f32 %v1292, %v1293
  %v1295 = vrot.slane %v1294, 2
  %v1296 = vadd.f32 %v1294, %v1295
  %v1297 = vrot.slane %v1296, 1
  %v1298 = vadd.f32 %v1296, %v1297
  %v1299 = vadd.f32 %v1150, %v1162
  %v1300 = vadd.f32 %v1299, %v1174
  %v1301 = vadd.f32 %v1300, %v1186
  %v1302 = vadd.f32 %v1301, %v1198
  %v1303 = vadd.f32 %v1302, %v1210
  %v1304 = vsel %vm1238, %v1222, 0.0
  %v1305 = vadd.f32 %v1303, %v1304
  %v1306 = vrot.slane %v1305, 4
  %v1307 = vadd.f32 %v1305, %v1306
  %v1308 = vrot.slane %v1307, 2
  %v1309 = vadd.f32 %v1307, %v1308
  %v1310 = vrot.slane %v1309, 1
  %v1311 = vadd.f32 %v1309, %v1310
  %v1312 = vadd.f32 %v1151, %v1163
  %v1313 = vadd.f32 %v1312, %v1175
  %v1314 = vadd.f32 %v1313, %v1187
  %v1315 = vadd.f32 %v1314, %v1199
  %v1316 = vadd.f32 %v1315, %v1211
  %v1317 = vsel %vm1238, %v1223, 0.0
  %v1318 = vadd.f32 %v1316, %v1317
  %v1319 = vrot.slane %v1318, 4
  %v1320 = vadd.f32 %v1318, %v1319
  %v1321 = vrot.slane %v1320, 2
  %v1322 = vadd.f32 %v1320, %v1321
  %v1323 = vrot.slane %v1322, 1
  %v1324 = vadd.f32 %v1322, %v1323
  %v1325 = vadd.f32 %v1152, %v1164
  %v1326 = vadd.f32 %v1325, %v1176
  %v1327 = vadd.f32 %v1326, %v1188
  %v1328 = vadd.f32 %v1327, %v1200
  %v1329 = vadd.f32 %v1328, %v1212
  %v1330 = vsel %vm1238, %v1224, 0.0
  %v1331 = vadd.f32 %v1329, %v1330
  %v1332 = vrot.slane %v1331, 4
  %v1333 = vadd.f32 %v1331, %v1332
  %v1334 = vrot.slane %v1333, 2
  %v1335 = vadd.f32 %v1333, %v1334
  %v1336 = vrot.slane %v1335, 1
  %v1337 = vadd.f32 %v1335, %v1336
  %v1338 = vadd.f32 %v1153, %v1165
  %v1339 = vadd.f32 %v1338, %v1177
  %v1340 = vadd.f32 %v1339, %v1189
  %v1341 = vadd.f32 %v1340, %v1201
  %v1342 = vadd.f32 %v1341, %v1213
  %v1343 = vsel %vm1238, %v1225, 0.0
  %v1344 = vadd.f32 %v1342, %v1343
  %v1345 = vrot.slane %v1344, 4
  %v1346 = vadd.f32 %v1344, %v1345
  %v1347 = vrot.slane %v1346, 2
  %v1348 = vadd.f32 %v1346, %v1347
  %v1349 = vrot.slane %v1348, 1
  %v1350 = vadd.f32 %v1348, %v1349
  %v1351 = vadd.f32 %v1154, %v1166
  %v1352 = vadd.f32 %v1351, %v1178
  %v1353 = vadd.f32 %v1352, %v1190
  %v1354 = vadd.f32 %v1353, %v1202
  %v1355 = vadd.f32 %v1354, %v1214
  %v1356 = vsel %vm1238, %v1226, 0.0
  %v1357 = vadd.f32 %v1355, %v1356
  %v1358 = vrot.slane %v1357, 4
  %v1359 = vadd.f32 %v1357, %v1358
  %v1360 = vrot.slane %v1359, 2
  %v1361 = vadd.f32 %v1359, %v1360
  %v1362 = vrot.slane %v1361, 1
  %v1363 = vadd.f32 %v1361, %v1362
  %v1364 = vadd.f32 %v1155, %v1167
  %v1365 = vadd.f32 %v1364, %v1179
  %v1366 = vadd.f32 %v1365, %v1191
  %v1367 = vadd.f32 %v1366, %v1203
  %v1368 = vadd.f32 %v1367, %v1215
  %v1369 = vsel %vm1238, %v1227, 0.0
  %v1370 = vadd.f32 %v1368, %v1369
  %v1371 = vrot.slane %v1370, 4
  %v1372 = vadd.f32 %v1370, %v1371
  %v1373 = vrot.slane %v1372, 2
  %v1374 = vadd.f32 %v1372, %v1373
  %v1375 = vrot.slane %v1374, 1
  %v1376 = vadd.f32 %v1374, %v1375
  %v1377 = vadd.f32 %v1156, %v1168
  %v1378 = vadd.f32 %v1377, %v1180
  %v1379 = vadd.f32 %v1378, %v1192
  %v1380 = vadd.f32 %v1379, %v1204
  %v1381 = vadd.f32 %v1380, %v1216
  %v1382 = vsel %vm1238, %v1228, 0.0
  %v1383 = vadd.f32 %v1381, %v1382
  %v1384 = vrot.slane %v1383, 4
  %v1385 = vadd.f32 %v1383, %v1384
  %v1386 = vrot.slane %v1385, 2
  %v1387 = vadd.f32 %v1385, %v1386
  %v1388 = vrot.slane %v1387, 1
  %v1389 = vadd.f32 %v1387, %v1388
  %v1390 = vmul.f32 %v1246, 0.020408163
  %v1391 = vmul.f32 %v1259, 0.020408163
  %v1392 = vmul.f32 %v1272, 0.020408163
  %v1393 = vmul.f32 %v1285, 0.020408163
  %v1394 = vmul.f32 %v1298, 0.020408163
  %v1395 = vmul.f32 %v1311, 0.020408163
  %v1396 = vmul.f32 %v1324, 0.020408163
  %v1397 = vmul.f32 %v1337, 0.020408163
  %v1398 = vmul.f32 %v1350, 0.020408163
  %v1399 = vmul.f32 %v1363, 0.020408163
  %v1400 = vmul.f32 %v1376, 0.020408163
  %v1401 = vmul.f32 %v1389, 0.020408163
  %v1402 = vmul.f32 %v1145, %v1145
  %v1403 = vmul.f32 %v1146, %v1146
  %v1404 = vmul.f32 %v1147, %v1147
  %v1405 = vmul.f32 %v1148, %v1148
  %v1406 = vmul.f32 %v1149, %v1149
  %v1407 = vmul.f32 %v1150, %v1150
  %v1408 = vmul.f32 %v1151, %v1151
  %v1409 = vmul.f32 %v1152, %v1152
  %v1410 = vmul.f32 %v1153, %v1153
  %v1411 = vmul.f32 %v1154, %v1154
  %v1412 = vmul.f32 %v1155, %v1155
  %v1413 = vmul.f32 %v1156, %v1156
  %v1414 = vmul.f32 %v1157, %v1157
  %v1415 = vmul.f32 %v1158, %v1158
  %v1416 = vmul.f32 %v1159, %v1159
  %v1417 = vmul.f32 %v1160, %v1160
  %v1418 = vmul.f32 %v1161, %v1161
  %v1419 = vmul.f32 %v1162, %v1162
  %v1420 = vmul.f32 %v1163, %v1163
  %v1421 = vmul.f32 %v1164, %v1164
  %v1422 = vmul.f32 %v1165, %v1165
  %v1423 = vmul.f32 %v1166, %v1166
  %v1424 = vmul.f32 %v1167, %v1167
  %v1425 = vmul.f32 %v1168, %v1168
  %v1426 = vmul.f32 %v1169, %v1169
  %v1427 = vmul.f32 %v1170, %v1170
  %v1428 = vmul.f32 %v1171, %v1171
  %v1429 = vmul.f32 %v1172, %v1172
  %v1430 = vmul.f32 %v1173, %v1173
  %v1431 = vmul.f32 %v1174, %v1174
  %v1432 = vmul.f32 %v1175, %v1175
  %v1433 = vmul.f32 %v1176, %v1176
  %v1434 = vmul.f32 %v1177, %v1177
  %v1435 = vmul.f32 %v1178, %v1178
  %v1436 = vmul.f32 %v1179, %v1179
  %v1437 = vmul.f32 %v1180, %v1180
  %v1438 = vmul.f32 %v1181, %v1181
  %v1439 = vmul.f32 %v1182, %v1182
  %v1440 = vmul.f32 %v1183, %v1183
  %v1441 = vmul.f32 %v1184, %v1184
  %v1442 = vmul.f32 %v1185, %v1185
  %v1443 = vmul.f32 %v1186, %v1186
  %v1444 = vmul.f32 %v1187, %v1187
  %v1445 = vmul.f32 %v1188, %v1188
  %v1446 = vmul.f32 %v1189, %v1189
  %v1447 = vmul.f32 %v1190, %v1190
  %v1448 = vmul.f32 %v1191, %v1191
  %v1449 = vmul.f32 %v1192, %v1192
  %v1450 = vmul.f32 %v1193, %v1193
  %v1451 = vmul.f32 %v1194, %v1194
  %v1452 = vmul.f32 %v1195, %v1195
  %v1453 = vmul.f32 %v1196, %v1196
  %v1454 = vmul.f32 %v1197, %v1197
  %v1455 = vmul.f32 %v1198, %v1198
  %v1456 = vmul.f32 %v1199, %v1199
  %v1457 = vmul.f32 %v1200, %v1200
  %v1458 = vmul.f32 %v1201, %v1201
  %v1459 = vmul.f32 %v1202, %v1202
  %v1460 = vmul.f32 %v1203, %v1203
  %v1461 = vmul.f32 %v1204, %v1204
  %v1462 = vmul.f32 %v1205, %v1205
  %v1463 = vmul.f32 %v1206, %v1206
  %v1464 = vmul.f32 %v1207, %v1207
  %v1465 = vmul.f32 %v1208, %v1208
  %v1466 = vmul.f32 %v1209, %v1209
  %v1467 = vmul.f32 %v1210, %v1210
  %v1468 = vmul.f32 %v1211, %v1211
  %v1469 = vmul.f32 %v1212, %v1212
  %v1470 = vmul.f32 %v1213, %v1213
  %v1471 = vmul.f32 %v1214, %v1214
  %v1472 = vmul.f32 %v1215, %v1215
  %v1473 = vmul.f32 %v1216, %v1216
  %v1474 = vmul.f32 %v1217, %v1217
  %v1475 = vmul.f32 %v1218, %v1218
  %v1476 = vmul.f32 %v1219, %v1219
  %v1477 = vmul.f32 %v1220, %v1220
  %v1478 = vmul.f32 %v1221, %v1221
  %v1479 = vmul.f32 %v1222, %v1222
  %v1480 = vmul.f32 %v1223, %v1223
  %v1481 = vmul.f32 %v1224, %v1224
  %v1482 = vmul.f32 %v1225, %v1225
  %v1483 = vmul.f32 %v1226, %v1226
  %v1484 = vmul.f32 %v1227, %v1227
  %v1485 = vmul.f32 %v1228, %v1228
  %v1486 = vadd.f32 %v1402, %v1414
  %v1487 = vadd.f32 %v1486, %v1426
  %v1488 = vadd.f32 %v1487, %v1438
  %v1489 = vadd.f32 %v1488, %v1450
  %v1490 = vadd.f32 %v1489, %v1462
  %v1491 = vsel %vm1238, %v1474, 0.0
  %v1492 = vadd.f32 %v1490, %v1491
  %v1493 = vrot.slane %v1492, 4
  %v1494 = vadd.f32 %v1492, %v1493
  %v1495 = vrot.slane %v1494, 2
  %v1496 = vadd.f32 %v1494, %v1495
  %v1497 = vrot.slane %v1496, 1
  %v1498 = vadd.f32 %v1496, %v1497
  %v1499 = vadd.f32 %v1403, %v1415
  %v1500 = vadd.f32 %v1499, %v1427
  %v1501 = vadd.f32 %v1500, %v1439
  %v1502 = vadd.f32 %v1501, %v1451
  %v1503 = vadd.f32 %v1502, %v1463
  %v1504 = vsel %vm1238, %v1475, 0.0
  %v1505 = vadd.f32 %v1503, %v1504
  %v1506 = vrot.slane %v1505, 4
  %v1507 = vadd.f32 %v1505, %v1506
  %v1508 = vrot.slane %v1507, 2
  %v1509 = vadd.f32 %v1507, %v1508
  %v1510 = vrot.slane %v1509, 1
  %v1511 = vadd.f32 %v1509, %v1510
  %v1512 = vadd.f32 %v1404, %v1416
  %v1513 = vadd.f32 %v1512, %v1428
  %v1514 = vadd.f32 %v1513, %v1440
  %v1515 = vadd.f32 %v1514, %v1452
  %v1516 = vadd.f32 %v1515, %v1464
  %v1517 = vsel %vm1238, %v1476, 0.0
  %v1518 = vadd.f32 %v1516, %v1517
  %v1519 = vrot.slane %v1518, 4
  %v1520 = vadd.f32 %v1518, %v1519
  %v1521 = vrot.slane %v1520, 2
  %v1522 = vadd.f32 %v1520, %v1521
  %v1523 = vrot.slane %v1522, 1
  %v1524 = vadd.f32 %v1522, %v1523
  %v1525 = vadd.f32 %v1405, %v1417
  %v1526 = vadd.f32 %v1525, %v1429
  %v1527 = vadd.f32 %v1526, %v1441
  %v1528 = vadd.f32 %v1527, %v1453
  %v1529 = vadd.f32 %v1528, %v1465
  %v1530 = vsel %vm1238, %v1477, 0.0
  %v1531 = vadd.f32 %v1529, %v1530
  %v1532 = vrot.slane %v1531, 4
  %v1533 = vadd.f32 %v1531, %v1532
  %v1534 = vrot.slane %v1533, 2
  %v1535 = vadd.f32 %v1533, %v1534
  %v1536 = vrot.slane %v1535, 1
  %v1537 = vadd.f32 %v1535, %v1536
  %v1538 = vadd.f32 %v1406, %v1418
  %v1539 = vadd.f32 %v1538, %v1430
  %v1540 = vadd.f32 %v1539, %v1442
  %v1541 = vadd.f32 %v1540, %v1454
  %v1542 = vadd.f32 %v1541, %v1466
  %v1543 = vsel %vm1238, %v1478, 0.0
  %v1544 = vadd.f32 %v1542, %v1543
  %v1545 = vrot.slane %v1544, 4
  %v1546 = vadd.f32 %v1544, %v1545
  %v1547 = vrot.slane %v1546, 2
  %v1548 = vadd.f32 %v1546, %v1547
  %v1549 = vrot.slane %v1548, 1
  %v1550 = vadd.f32 %v1548, %v1549
  %v1551 = vadd.f32 %v1407, %v1419
  %v1552 = vadd.f32 %v1551, %v1431
  %v1553 = vadd.f32 %v1552, %v1443
  %v1554 = vadd.f32 %v1553, %v1455
  %v1555 = vadd.f32 %v1554, %v1467
  %v1556 = vsel %vm1238, %v1479, 0.0
  %v1557 = vadd.f32 %v1555, %v1556
  %v1558 = vrot.slane %v1557, 4
  %v1559 = vadd.f32 %v1557, %v1558
  %v1560 = vrot.slane %v1559, 2
  %v1561 = vadd.f32 %v1559, %v1560
  %v1562 = vrot.slane %v1561, 1
  %v1563 = vadd.f32 %v1561, %v1562
  %v1564 = vadd.f32 %v1408, %v1420
  %v1565 = vadd.f32 %v1564, %v1432
  %v1566 = vadd.f32 %v1565, %v1444
  %v1567 = vadd.f32 %v1566, %v1456
  %v1568 = vadd.f32 %v1567, %v1468
  %v1569 = vsel %vm1238, %v1480, 0.0
  %v1570 = vadd.f32 %v1568, %v1569
  %v1571 = vrot.slane %v1570, 4
  %v1572 = vadd.f32 %v1570, %v1571
  %v1573 = vrot.slane %v1572, 2
  %v1574 = vadd.f32 %v1572, %v1573
  %v1575 = vrot.slane %v1574, 1
  %v1576 = vadd.f32 %v1574, %v1575
  %v1577 = vadd.f32 %v1409, %v1421
  %v1578 = vadd.f32 %v1577, %v1433
  %v1579 = vadd.f32 %v1578, %v1445
  %v1580 = vadd.f32 %v1579, %v1457
  %v1581 = vadd.f32 %v1580, %v1469
  %v1582 = vsel %vm1238, %v1481, 0.0
  %v1583 = vadd.f32 %v1581, %v1582
  %v1584 = vrot.slane %v1583, 4
  %v1585 = vadd.f32 %v1583, %v1584
  %v1586 = vrot.slane %v1585, 2
  %v1587 = vadd.f32 %v1585, %v1586
  %v1588 = vrot.slane %v1587, 1
  %v1589 = vadd.f32 %v1587, %v1588
  %v1590 = vadd.f32 %v1410, %v1422
  %v1591 = vadd.f32 %v1590, %v1434
  %v1592 = vadd.f32 %v1591, %v1446
  %v1593 = vadd.f32 %v1592, %v1458
  %v1594 = vadd.f32 %v1593, %v1470
  %v1595 = vsel %vm1238, %v1482, 0.0
  %v1596 = vadd.f32 %v1594, %v1595
  %v1597 = vrot.slane %v1596, 4
  %v1598 = vadd.f32 %v1596, %v1597
  %v1599 = vrot.slane %v1598, 2
  %v1600 = vadd.f32 %v1598, %v1599
  %v1601 = vrot.slane %v1600, 1
  %v1602 = vadd.f32 %v1600, %v1601
  %v1603 = vadd.f32 %v1411, %v1423
  %v1604 = vadd.f32 %v1603, %v1435
  %v1605 = vadd.f32 %v1604, %v1447
  %v1606 = vadd.f32 %v1605, %v1459
  %v1607 = vadd.f32 %v1606, %v1471
  %v1608 = vsel %vm1238, %v1483, 0.0
  %v1609 = vadd.f32 %v1607, %v1608
  %v1610 = vrot.slane %v1609, 4
  %v1611 = vadd.f32 %v1609, %v1610
  %v1612 = vrot.slane %v1611, 2
  %v1613 = vadd.f32 %v1611, %v1612
  %v1614 = vrot.slane %v1613, 1
  %v1615 = vadd.f32 %v1613, %v1614
  %v1616 = vadd.f32 %v1412, %v1424
  %v1617 = vadd.f32 %v1616, %v1436
  %v1618 = vadd.f32 %v1617, %v1448
  %v1619 = vadd.f32 %v1618, %v1460
  %v1620 = vadd.f32 %v1619, %v1472
  %v1621 = vsel %vm1238, %v1484, 0.0
  %v1622 = vadd.f32 %v1620, %v1621
  %v1623 = vrot.slane %v1622, 4
  %v1624 = vadd.f32 %v1622, %v1623
  %v1625 = vrot.slane %v1624, 2
  %v1626 = vadd.f32 %v1624, %v1625
  %v1627 = vrot.slane %v1626, 1
  %v1628 = vadd.f32 %v1626, %v1627
  %v1629 = vadd.f32 %v1413, %v1425
  %v1630 = vadd.f32 %v1629, %v1437
  %v1631 = vadd.f32 %v1630, %v1449
  %v1632 = vadd.f32 %v1631, %v1461
  %v1633 = vadd.f32 %v1632, %v1473
  %v1634 = vsel %vm1238, %v1485, 0.0
  %v1635 = vadd.f32 %v1633, %v1634
  %v1636 = vrot.slane %v1635, 4
  %v1637 = vadd.f32 %v1635, %v1636
  %v1638 = vrot.slane %v1637, 2
  %v1639 = vadd.f32 %v1637, %v1638
  %v1640 = vrot.slane %v1639, 1
  %v1641 = vadd.f32 %v1639, %v1640
  %v1642 = vmul.f32 %v1498, 0.020408163
  %v1643 = vmul.f32 %v1511, 0.020408163
  %v1644 = vmul.f32 %v1524, 0.020408163
  %v1645 = vmul.f32 %v1537, 0.020408163
  %v1646 = vmul.f32 %v1550, 0.020408163
  %v1647 = vmul.f32 %v1563, 0.020408163
  %v1648 = vmul.f32 %v1576, 0.020408163
  %v1649 = vmul.f32 %v1589, 0.020408163
  %v1650 = vmul.f32 %v1602, 0.020408163
  %v1651 = vmul.f32 %v1615, 0.020408163
  %v1652 = vmul.f32 %v1628, 0.020408163
  %v1653 = vmul.f32 %v1641, 0.020408163
  %v1654 = vmul.f32 %v1390, %v1390
  %v1655 = vmul.f32 %v1391, %v1391
  %v1656 = vmul.f32 %v1392, %v1392
  %v1657 = vmul.f32 %v1393, %v1393
  %v1658 = vmul.f32 %v1394, %v1394
  %v1659 = vmul.f32 %v1395, %v1395
  %v1660 = vmul.f32 %v1396, %v1396
  %v1661 = vmul.f32 %v1397, %v1397
  %v1662 = vmul.f32 %v1398, %v1398
  %v1663 = vmul.f32 %v1399, %v1399
  %v1664 = vmul.f32 %v1400, %v1400
  %v1665 = vmul.f32 %v1401, %v1401
  %v1666 = vsub.f32 %v1642, %v1654
  %v1667 = vsub.f32 %v1643, %v1655
  %v1668 = vsub.f32 %v1644, %v1656
  %v1669 = vsub.f32 %v1645, %v1657
  %v1670 = vsub.f32 %v1646, %v1658
  %v1671 = vsub.f32 %v1647, %v1659
  %v1672 = vsub.f32 %v1648, %v1660
  %v1673 = vsub.f32 %v1649, %v1661
  %v1674 = vsub.f32 %v1650, %v1662
  %v1675 = vsub.f32 %v1651, %v1663
  %v1676 = vsub.f32 %v1652, %v1664
  %v1677 = vsub.f32 %v1653, %v1665
  %v1678 = vadd.f32 %v1666, 1e-05
  %v1679 = vadd.f32 %v1667, 1e-05
  %v1680 = vadd.f32 %v1668, 1e-05
  %v1681 = vadd.f32 %v1669, 1e-05
  %v1682 = vadd.f32 %v1670, 1e-05
  %v1683 = vadd.f32 %v1671, 1e-05
  %v1684 = vadd.f32 %v1672, 1e-05
  %v1685 = vadd.f32 %v1673, 1e-05
  %v1686 = vadd.f32 %v1674, 1e-05
  %v1687 = vadd.f32 %v1675, 1e-05
  %v1688 = vadd.f32 %v1676, 1e-05
  %v1689 = vadd.f32 %v1677, 1e-05
  %v1690 = vrsqrt.pop %v1678
  %v1691 = vrsqrt.pop %v1679
  %v1692 = vrsqrt.pop %v1680
  %v1693 = vrsqrt.pop %v1681
  %v1694 = vrsqrt.pop %v1682
  %v1695 = vrsqrt.pop %v1683
  %v1696 = vrsqrt.pop %v1684
  %v1697 = vrsqrt.pop %v1685
  %v1698 = vrsqrt.pop %v1686
  %v1699 = vrsqrt.pop %v1687
  %v1700 = vrsqrt.pop %v1688
  %v1701 = vrsqrt.pop %v1689
  %v1714 = vcombine.low %v1690, %v1691
  %v1715 = vcombine.low %v1692, %v1693
  %v1716 = vcombine.low %v1694, %v1695
  %v1717 = vcombine.low %v1696, %v1697
  %v1719 = vunpack.c.l.s4 1966171168
  %v1720 = vunpack.c.0.s8 %v1719
  %v1721 = vlaneseq
  %v1722 = vshrl.u32 %v1721, 7
  %v1723 = vsub.s32 %v1720, %v1722
  %v1724 = vrot.slane %v1714, %v1723
  %v1726 = vunpack.c.l.s4 1966171168
  %v1727 = vunpack.c.0.s8 %v1726
  %v1728 = vlaneseq
  %v1729 = vshrl.u32 %v1728, 7
  %v1730 = vsub.s32 %v1727, %v1729
  %v1731 = vrot.slane %v1715, %v1730
  %v1733 = vunpack.c.l.s4 1966171168
  %v1734 = vunpack.c.0.s8 %v1733
  %v1735 = vlaneseq
  %v1736 = vshrl.u32 %v1735, 7
  %v1737 = vsub.s32 %v1734, %v1736
  %v1738 = vrot.slane %v1716, %v1737
  %v1740 = vunpack.c.l.s4 1966171168
  %v1741 = vunpack.c.0.s8 %v1740
  %v1742 = vlaneseq
  %v1743 = vshrl.u32 %v1742, 7
  %v1744 = vsub.s32 %v1741, %v1743
  %v1745 = vrot.slane %v1717, %v1744
  %v1746 = vcombine.low %v1724, %v1731
  %v1747 = vcombine.low %v1738, %v1745
  %v1749 = vunpack.c.l.s4 1966171168
  %v1750 = vunpack.c.0.s8 %v1749
  %v1751 = vlaneseq
  %v1752 = vshrl.u32 %v1751, 7
  %v1753 = vsub.s32 %v1750, %v1752
  %v1754 = vrot.slane %v1746, %v1753
  %v1756 = vunpack.c.l.s4 1966171168
  %v1757 = vunpack.c.0.s8 %v1756
  %v1758 = vlaneseq
  %v1759 = vshrl.u32 %v1758, 7
  %v1760 = vsub.s32 %v1757, %v1759
  %v1761 = vrot.slane %v1747, %v1760
  %v1762 = vcombine.low %v1754, %v1761
  %v1763 = vcombine.low %v1698, %v1699
  %v1764 = vcombine.low %v1700, %v1701
  %v1766 = vunpack.c.l.s4 1966171168
  %v1767 = vunpack.c.0.s8 %v1766
  %v1768 = vlaneseq
  %v1769 = vshrl.u32 %v1768, 7
  %v1770 = vsub.s32 %v1767, %v1769
  %v1771 = vrot.slane %v1763, %v1770
  %v1773 = vunpack.c.l.s4 1966171168
  %v1774 = vunpack.c.0.s8 %v1773
  %v1775 = vlaneseq
  %v1776 = vshrl.u32 %v1775, 7
  %v1777 = vsub.s32 %v1774, %v1776
  %v1778 = vrot.slane %v1764, %v1777
  %v1779 = vcombine.low %v1771, %v1778
  %v1781 = vunpack.c.l.s4 1966171168
  %v1782 = vunpack.c.0.s8 %v1781
  %v1783 = vlaneseq
  %v1784 = vshrl.u32 %v1783, 7
  %v1785 = vsub.s32 %v1782, %v1784
  %v1786 = vrot.slane %v1779, %v1785
  %v1789 = vmul.f32 %v1229, %v1762
  %v1790 = vmul.f32 %v1230, %v1786
  %v1793 = vlaneseq
  %v1794 = vshrl.u32 %v1793, 7
  %v1795 = vsub.s32 0, %v1794
  %v1796 = vrot.slane %v1789, %v1795
  %v1797 = vlaneseq
  %v1798 = vshrl.u32 %v1797, 7
  %v1799 = vsub.s32 1, %v1798
  %v1800 = vrot.slane %v1789, %v1799
  %v1801 = vlaneseq
  %v1802 = vshrl.u32 %v1801, 7
  %v1803 = vsub.s32 2, %v1802
  %v1804 = vrot.slane %v1789, %v1803
  %v1805 = vlaneseq
  %v1806 = vshrl.u32 %v1805, 7
  %v1807 = vsub.s32 3, %v1806
  %v1808 = vrot.slane %v1789, %v1807
  %v1809 = vlaneseq
  %v1810 = vshrl.u32 %v1809, 7
  %v1811 = vsub.s32 4, %v1810
  %v1812 = vrot.slane %v1789, %v1811
  %v1813 = vlaneseq
  %v1814 = vshrl.u32 %v1813, 7
  %v1815 = vsub.s32 5, %v1814
  %v1816 = vrot.slane %v1789, %v1815
  %v1817 = vlaneseq
  %v1818 = vshrl.u32 %v1817, 7
  %v1819 = vsub.s32 6, %v1818
  %v1820 = vrot.slane %v1789, %v1819
  %v1821 = vlaneseq
  %v1822 = vshrl.u32 %v1821, 7
  %v1823 = vsub.s32 7, %v1822
  %v1824 = vrot.slane %v1789, %v1823
  %v1825 = vlaneseq
  %v1826 = vshrl.u32 %v1825, 7
  %v1827 = vsub.s32 0, %v1826
  %v1828 = vrot.slane %v1790, %v1827
  %v1829 = vlaneseq
  %v1830 = vshrl.u32 %v1829, 7
  %v1831 = vsub.s32 1, %v1830
  %v1832 = vrot.slane %v1790, %v1831
  %v1833 = vlaneseq
  %v1834 = vshrl.u32 %v1833, 7
  %v1835 = vsub.s32 2, %v1834
  %v1836 = vrot.slane %v1790, %v1835
  %v1837 = vlaneseq
  %v1838 = vshrl.u32 %v1837, 7
  %v1839 = vsub.s32 3, %v1838
  %v1840 = vrot.slane %v1790, %v1839
  %v1853 = vmul.f32 %v1145, %v1796
  %v1854 = vmul.f32 %v1146, %v1800
  %v1855 = vmul.f32 %v1147, %v1804
  %v1856 = vmul.f32 %v1148, %v1808
  %v1857 = vmul.f32 %v1149, %v1812
  %v1858 = vmul.f32 %v1150, %v1816
  %v1859 = vmul.f32 %v1151, %v1820
  %v1860 = vmul.f32 %v1152, %v1824
  %v1861 = vmul.f32 %v1153, %v1828
  %v1862 = vmul.f32 %v1154, %v1832
  %v1863 = vmul.f32 %v1155, %v1836
  %v1864 = vmul.f32 %v1156, %v1840
  %v1865 = vmul.f32 %v1157, %v1796
  %v1866 = vmul.f32 %v1158, %v1800
  %v1867 = vmul.f32 %v1159, %v1804
  %v1868 = vmul.f32 %v1160, %v1808
  %v1869 = vmul.f32 %v1161, %v1812
  %v1870 = vmul.f32 %v1162, %v1816
  %v1871 = vmul.f32 %v1163, %v1820
  %v1872 = vmul.f32 %v1164, %v1824
  %v1873 = vmul.f32 %v1165, %v1828
  %v1874 = vmul.f32 %v1166, %v1832
  %v1875 = vmul.f32 %v1167, %v1836
  %v1876 = vmul.f32 %v1168, %v1840
  %v1877 = vmul.f32 %v1169, %v1796
  %v1878 = vmul.f32 %v1170, %v1800
  %v1879 = vmul.f32 %v1171, %v1804
  %v1880 = vmul.f32 %v1172, %v1808
  %v1881 = vmul.f32 %v1173, %v1812
  %v1882 = vmul.f32 %v1174, %v1816
  %v1883 = vmul.f32 %v1175, %v1820
  %v1884 = vmul.f32 %v1176, %v1824
  %v1885 = vmul.f32 %v1177, %v1828
  %v1886 = vmul.f32 %v1178, %v1832
  %v1887 = vmul.f32 %v1179, %v1836
  %v1888 = vmul.f32 %v1180, %v1840
  %v1889 = vmul.f32 %v1181, %v1796
  %v1890 = vmul.f32 %v1182, %v1800
  %v1891 = vmul.f32 %v1183, %v1804
  %v1892 = vmul.f32 %v1184, %v1808
  %v1893 = vmul.f32 %v1185, %v1812
  %v1894 = vmul.f32 %v1186, %v1816
  %v1895 = vmul.f32 %v1187, %v1820
  %v1896 = vmul.f32 %v1188, %v1824
  %v1897 = vmul.f32 %v1189, %v1828
  %v1898 = vmul.f32 %v1190, %v1832
  %v1899 = vmul.f32 %v1191, %v1836
  %v1900 = vmul.f32 %v1192, %v1840
  %v1901 = vmul.f32 %v1193, %v1796
  %v1902 = vmul.f32 %v1194, %v1800
  %v1903 = vmul.f32 %v1195, %v1804
  %v1904 = vmul.f32 %v1196, %v1808
  %v1905 = vmul.f32 %v1197, %v1812
  %v1906 = vmul.f32 %v1198, %v1816
  %v1907 = vmul.f32 %v1199, %v1820
  %v1908 = vmul.f32 %v1200, %v1824
  %v1909 = vmul.f32 %v1201, %v1828
  %v1910 = vmul.f32 %v1202, %v1832
  %v1911 = vmul.f32 %v1203, %v1836
  %v1912 = vmul.f32 %v1204, %v1840
  %v1913 = vmul.f32 %v1205, %v1796
  %v1914 = vmul.f32 %v1206, %v1800
  %v1915 = vmul.f32 %v1207, %v1804
  %v1916 = vmul.f32 %v1208, %v1808
  %v1917 = vmul.f32 %v1209, %v1812
  %v1918 = vmul.f32 %v1210, %v1816
  %v1919 = vmul.f32 %v1211, %v1820
  %v1920 = vmul.f32 %v1212, %v1824
  %v1921 = vmul.f32 %v1213, %v1828
  %v1922 = vmul.f32 %v1214, %v1832
  %v1923 = vmul.f32 %v1215, %v1836
  %v1924 = vmul.f32 %v1216, %v1840
  %v1925 = vmul.f32 %v1217, %v1796
  %v1926 = vmul.f32 %v1218, %v1800
  %v1927 = vmul.f32 %v1219, %v1804
  %v1928 = vmul.f32 %v1220, %v1808
  %v1929 = vmul.f32 %v1221, %v1812
  %v1930 = vmul.f32 %v1222, %v1816
  %v1931 = vmul.f32 %v1223, %v1820
  %v1932 = vmul.f32 %v1224, %v1824
  %v1933 = vmul.f32 %v1225, %v1828
  %v1934 = vmul.f32 %v1226, %v1832
  %v1935 = vmul.f32 %v1227, %v1836
  %v1936 = vmul.f32 %v1228, %v1840
  %v1937 = vmul.f32 %v1390, %v1796
  %v1938 = vmul.f32 %v1391, %v1800
  %v1939 = vmul.f32 %v1392, %v1804
  %v1940 = vmul.f32 %v1393, %v1808
  %v1941 = vmul.f32 %v1394, %v1812
  %v1942 = vmul.f32 %v1395, %v1816
  %v1943 = vmul.f32 %v1396, %v1820
  %v1944 = vmul.f32 %v1397, %v1824
  %v1945 = vmul.f32 %v1398, %v1828
  %v1946 = vmul.f32 %v1399, %v1832
  %v1947 = vmul.f32 %v1400, %v1836
  %v1948 = vmul.f32 %v1401, %v1840
  %v1961 = vcombine.low %v1937, %v1938
  %v1962 = vcombine.low %v1939, %v1940
  %v1963 = vcombine.low %v1941, %v1942
  %v1964 = vcombine.low %v1943, %v1944
  %v1966 = vunpack.c.l.s4 1966171168
  %v1967 = vunpack.c.0.s8 %v1966
  %v1968 = vlaneseq
  %v1969 = vshrl.u32 %v1968, 7
  %v1970 = vsub.s32 %v1967, %v1969
  %v1971 = vrot.slane %v1961, %v1970
  %v1973 = vunpack.c.l.s4 1966171168
  %v1974 = vunpack.c.0.s8 %v1973
  %v1975 = vlaneseq
  %v1976 = vshrl.u32 %v1975, 7
  %v1977 = vsub.s32 %v1974, %v1976
  %v1978 = vrot.slane %v1962, %v1977
  %v1980 = vunpack.c.l.s4 1966171168
  %v1981 = vunpack.c.0.s8 %v1980
  %v1982 = vlaneseq
  %v1983 = vshrl.u32 %v1982, 7
  %v1984 = vsub.s32 %v1981, %v1983
  %v1985 = vrot.slane %v1963, %v1984
  %v1987 = vunpack.c.l.s4 1966171168
  %v1988 = vunpack.c.0.s8 %v1987
  %v1989 = vlaneseq
  %v1990 = vshrl.u32 %v1989, 7
  %v1991 = vsub.s32 %v1988, %v1990
  %v1992 = vrot.slane %v1964, %v1991
  %v1993 = vcombine.low %v1971, %v1978
  %v1994 = vcombine.low %v1985, %v1992
  %v1996 = vunpack.c.l.s4 1966171168
  %v1997 = vunpack.c.0.s8 %v1996
  %v1998 = vlaneseq
  %v1999 = vshrl.u32 %v1998, 7
  %v2000 = vsub.s32 %v1997, %v1999
  %v2001 = vrot.slane %v1993, %v2000
  %v2003 = vunpack.c.l.s4 1966171168
  %v2004 = vunpack.c.0.s8 %v2003
  %v2005 = vlaneseq
  %v2006 = vshrl.u32 %v2005, 7
  %v2007 = vsub.s32 %v2004, %v2006
  %v2008 = vrot.slane %v1994, %v2007
  %v2009 = vcombine.low %v2001, %v2008
  %v2010 = vcombine.low %v1945, %v1946
  %v2011 = vcombine.low %v1947, %v1948
  %v2013 = vunpack.c.l.s4 1966171168
  %v2014 = vunpack.c.0.s8 %v2013
  %v2015 = vlaneseq
  %v2016 = vshrl.u32 %v2015, 7
  %v2017 = vsub.s32 %v2014, %v2016
  %v2018 = vrot.slane %v2010, %v2017
  %v2020 = vunpack.c.l.s4 1966171168
  %v2021 = vunpack.c.0.s8 %v2020
  %v2022 = vlaneseq
  %v2023 = vshrl.u32 %v2022, 7
  %v2024 = vsub.s32 %v2021, %v2023
  %v2025 = vrot.slane %v2011, %v2024
  %v2026 = vcombine.low %v2018, %v2025
  %v2028 = vunpack.c.l.s4 1966171168
  %v2029 = vunpack.c.0.s8 %v2028
  %v2030 = vlaneseq
  %v2031 = vshrl.u32 %v2030, 7
  %v2032 = vsub.s32 %v2029, %v2031
  %v2033 = vrot.slane %v2026, %v2032
  %v2036 = vsub.f32 %v1231, %v2009
  %v2037 = vsub.f32 %v1232, %v2033
  %v2040 = vlaneseq
  %v2041 = vshrl.u32 %v2040, 7
  %v2042 = vsub.s32 0, %v2041
  %v2043 = vrot.slane %v2036, %v2042
  %v2044 = vlaneseq
  %v2045 = vshrl.u32 %v2044, 7
  %v2046 = vsub.s32 1, %v2045
  %v2047 = vrot.slane %v2036, %v2046
  %v2048 = vlaneseq
  %v2049 = vshrl.u32 %v2048, 7
  %v2050 = vsub.s32 2, %v2049
  %v2051 = vrot.slane %v2036, %v2050
  %v2052 = vlaneseq
  %v2053 = vshrl.u32 %v2052, 7
  %v2054 = vsub.s32 3, %v2053
  %v2055 = vrot.slane %v2036, %v2054
  %v2056 = vlaneseq
  %v2057 = vshrl.u32 %v2056, 7
  %v2058 = vsub.s32 4, %v2057
  %v2059 = vrot.slane %v2036, %v2058
  %v2060 = vlaneseq
  %v2061 = vshrl.u32 %v2060, 7
  %v2062 = vsub.s32 5, %v2061
  %v2063 = vrot.slane %v2036, %v2062
  %v2064 = vlaneseq
  %v2065 = vshrl.u32 %v2064, 7
  %v2066 = vsub.s32 6, %v2065
  %v2067 = vrot.slane %v2036, %v2066
  %v2068 = vlaneseq
  %v2069 = vshrl.u32 %v2068, 7
  %v2070 = vsub.s32 7, %v2069
  %v2071 = vrot.slane %v2036, %v2070
  %v2072 = vlaneseq
  %v2073 = vshrl.u32 %v2072, 7
  %v2074 = vsub.s32 0, %v2073
  %v2075 = vrot.slane %v2037, %v2074
  %v2076 = vlaneseq
  %v2077 = vshrl.u32 %v2076, 7
  %v2078 = vsub.s32 1, %v2077
  %v2079 = vrot.slane %v2037, %v2078
  %v2080 = vlaneseq
  %v2081 = vshrl.u32 %v2080, 7
  %v2082 = vsub.s32 2, %v2081
  %v2083 = vrot.slane %v2037, %v2082
  %v2084 = vlaneseq
  %v2085 = vshrl.u32 %v2084, 7
  %v2086 = vsub.s32 3, %v2085
  %v2087 = vrot.slane %v2037, %v2086
  %v2100 = vadd.f32 %v1853, %v2043
  %v2101 = vadd.f32 %v1854, %v2047
  %v2102 = vadd.f32 %v1855, %v2051
  %v2103 = vadd.f32 %v1856, %v2055
  %v2104 = vadd.f32 %v1857, %v2059
  %v2105 = vadd.f32 %v1858, %v2063
  %v2106 = vadd.f32 %v1859, %v2067
  %v2107 = vadd.f32 %v1860, %v2071
  %v2108 = vadd.f32 %v1861, %v2075
  %v2109 = vadd.f32 %v1862, %v2079
  %v2110 = vadd.f32 %v1863, %v2083
  %v2111 = vadd.f32 %v1864, %v2087
  %v2112 = vadd.f32 %v1865, %v2043
  %v2113 = vadd.f32 %v1866, %v2047
  %v2114 = vadd.f32 %v1867, %v2051
  %v2115 = vadd.f32 %v1868, %v2055
  %v2116 = vadd.f32 %v1869, %v2059
  %v2117 = vadd.f32 %v1870, %v2063
  %v2118 = vadd.f32 %v1871, %v2067
  %v2119 = vadd.f32 %v1872, %v2071
  %v2120 = vadd.f32 %v1873, %v2075
  %v2121 = vadd.f32 %v1874, %v2079
  %v2122 = vadd.f32 %v1875, %v2083
  %v2123 = vadd.f32 %v1876, %v2087
  %v2124 = vadd.f32 %v1877, %v2043
  %v2125 = vadd.f32 %v1878, %v2047
  %v2126 = vadd.f32 %v1879, %v2051
  %v2127 = vadd.f32 %v1880, %v2055
  %v2128 = vadd.f32 %v1881, %v2059
  %v2129 = vadd.f32 %v1882, %v2063
  %v2130 = vadd.f32 %v1883, %v2067
  %v2131 = vadd.f32 %v1884, %v2071
  %v2132 = vadd.f32 %v1885, %v2075
  %v2133 = vadd.f32 %v1886, %v2079
  %v2134 = vadd.f32 %v1887, %v2083
  %v2135 = vadd.f32 %v1888, %v2087
  %v2136 = vadd.f32 %v1889, %v2043
  %v2137 = vadd.f32 %v1890, %v2047
  %v2138 = vadd.f32 %v1891, %v2051
  %v2139 = vadd.f32 %v1892, %v2055
  %v2140 = vadd.f32 %v1893, %v2059
  %v2141 = vadd.f32 %v1894, %v2063
  %v2142 = vadd.f32 %v1895, %v2067
  %v2143 = vadd.f32 %v1896, %v2071
  %v2144 = vadd.f32 %v1897, %v2075
  %v2145 = vadd.f32 %v1898, %v2079
  %v2146 = vadd.f32 %v1899, %v2083
  %v2147 = vadd.f32 %v1900, %v2087
  %v2148 = vadd.f32 %v1901, %v2043
  %v2149 = vadd.f32 %v1902, %v2047
  %v2150 = vadd.f32 %v1903, %v2051
  %v2151 = vadd.f32 %v1904, %v2055
  %v2152 = vadd.f32 %v1905, %v2059
  %v2153 = vadd.f32 %v1906, %v2063
  %v2154 = vadd.f32 %v1907, %v2067
  %v2155 = vadd.f32 %v1908, %v2071
  %v2156 = vadd.f32 %v1909, %v2075
  %v2157 = vadd.f32 %v1910, %v2079
  %v2158 = vadd.f32 %v1911, %v2083
  %v2159 = vadd.f32 %v1912, %v2087
  %v2160 = vadd.f32 %v1913, %v2043
  %v2161 = vadd.f32 %v1914, %v2047
  %v2162 = vadd.f32 %v1915, %v2051
  %v2163 = vadd.f32 %v1916, %v2055
  %v2164 = vadd.f32 %v1917, %v2059
  %v2165 = vadd.f32 %v1918, %v2063
  %v2166 = vadd.f32 %v1919, %v2067
  %v2167 = vadd.f32 %v1920, %v2071
  %v2168 = vadd.f32 %v1921, %v2075
  %v2169 = vadd.f32 %v1922, %v2079
  %v2170 = vadd.f32 %v1923, %v2083
  %v2171 = vadd.f32 %v1924, %v2087
  %v2172 = vadd.f32 %v1925, %v2043
  %v2173 = vadd.f32 %v1926, %v2047
  %v2174 = vadd.f32 %v1927, %v2051
  %v2175 = vadd.f32 %v1928, %v2055
  %v2176 = vadd.f32 %v1929, %v2059
  %v2177 = vadd.f32 %v1930, %v2063
  %v2178 = vadd.f32 %v1931, %v2067
  %v2179 = vadd.f32 %v1932, %v2071
  %v2180 = vadd.f32 %v1933, %v2075
  %v2181 = vadd.f32 %v1934, %v2079
  %v2182 = vadd.f32 %v1935, %v2083
  %v2183 = vadd.f32 %v1936, %v2087
  %2184 = vst [vmem:[%s8] sm:$0xff] %v2100
  %2185 = vst [vmem:[%s8 + $0x8] sm:$0xff] %v2101
  %2186 = vst [vmem:[%s8 + $0x10] sm:$0xff] %v2102
  %2187 = vst [vmem:[%s8 + $0x18] sm:$0xff] %v2103
  %2188 = vst [vmem:[%s8 + $0x20] sm:$0xff] %v2104
  %2189 = vst [vmem:[%s8 + $0x28] sm:$0xff] %v2105
  %2190 = vst [vmem:[%s8 + $0x30] sm:$0xff] %v2106
  %2191 = vst [vmem:[%s8 + $0x38] sm:$0xff] %v2107
  %2192 = vst [vmem:[%s8 + $0x40] sm:$0xff] %v2108
  %2193 = vst [vmem:[%s8 + $0x48] sm:$0xff] %v2109
  %2194 = vst [vmem:[%s8 + $0x50] sm:$0xff] %v2110
  %2195 = vst [vmem:[%s8 + $0x58] sm:$0xff] %v2111
  %2196 = vst [vmem:[%s8 + $0x68] sm:$0xff] %v2112
  %2197 = vst [vmem:[%s8 + $0x70] sm:$0xff] %v2113
  %2198 = vst [vmem:[%s8 + $0x78] sm:$0xff] %v2114
  %2199 = vst [vmem:[%s8 + $0x80] sm:$0xff] %v2115
  %2200 = vst [vmem:[%s8 + $0x88] sm:$0xff] %v2116
  %2201 = vst [vmem:[%s8 + $0x90] sm:$0xff] %v2117
  %2202 = vst [vmem:[%s8 + $0x98] sm:$0xff] %v2118
  %2203 = vst [vmem:[%s8 + $0xa0] sm:$0xff] %v2119
  %2204 = vst [vmem:[%s8 + $0xa8] sm:$0xff] %v2120
  %2205 = vst [vmem:[%s8 + $0xb0] sm:$0xff] %v2121
  %2206 = vst [vmem:[%s8 + $0xb8] sm:$0xff] %v2122
  %2207 = vst [vmem:[%s8 + $0xc0] sm:$0xff] %v2123
  %2208 = vst [vmem:[%s8 + $0xd0] sm:$0xff] %v2124
  %2209 = vst [vmem:[%s8 + $0xd8] sm:$0xff] %v2125
  %2210 = vst [vmem:[%s8 + $0xe0] sm:$0xff] %v2126
  %2211 = vst [vmem:[%s8 + $0xe8] sm:$0xff] %v2127
  %2212 = vst [vmem:[%s8 + $0xf0] sm:$0xff] %v2128
  %2213 = vst [vmem:[%s8 + $0xf8] sm:$0xff] %v2129
  %2214 = vst [vmem:[%s8 + $0x100] sm:$0xff] %v2130
  %2215 = vst [vmem:[%s8 + $0x108] sm:$0xff] %v2131
  %2216 = vst [vmem:[%s8 + $0x110] sm:$0xff] %v2132
  %2217 = vst [vmem:[%s8 + $0x118] sm:$0xff] %v2133
  %2218 = vst [vmem:[%s8 + $0x120] sm:$0xff] %v2134
  %2219 = vst [vmem:[%s8 + $0x128] sm:$0xff] %v2135
  %2220 = vst [vmem:[%s8 + $0x138] sm:$0xff] %v2136
  %2221 = vst [vmem:[%s8 + $0x140] sm:$0xff] %v2137
  %2222 = vst [vmem:[%s8 + $0x148] sm:$0xff] %v2138
  %2223 = vst [vmem:[%s8 + $0x150] sm:$0xff] %v2139
  %2224 = vst [vmem:[%s8 + $0x158] sm:$0xff] %v2140
  %2225 = vst [vmem:[%s8 + $0x160] sm:$0xff] %v2141
  %2226 = vst [vmem:[%s8 + $0x168] sm:$0xff] %v2142
  %2227 = vst [vmem:[%s8 + $0x170] sm:$0xff] %v2143
  %2228 = vst [vmem:[%s8 + $0x178] sm:$0xff] %v2144
  %2229 = vst [vmem:[%s8 + $0x180] sm:$0xff] %v2145
  %2230 = vst [vmem:[%s8 + $0x188] sm:$0xff] %v2146
  %2231 = vst [vmem:[%s8 + $0x190] sm:$0xff] %v2147
  %2232 = vst [vmem:[%s8 + $0x1a0] sm:$0xff] %v2148
  %2233 = vst [vmem:[%s8 + $0x1a8] sm:$0xff] %v2149
  %2234 = vst [vmem:[%s8 + $0x1b0] sm:$0xff] %v2150
  %2235 = vst [vmem:[%s8 + $0x1b8] sm:$0xff] %v2151
  %2236 = vst [vmem:[%s8 + $0x1c0] sm:$0xff] %v2152
  %2237 = vst [vmem:[%s8 + $0x1c8] sm:$0xff] %v2153
  %2238 = vst [vmem:[%s8 + $0x1d0] sm:$0xff] %v2154
  %2239 = vst [vmem:[%s8 + $0x1d8] sm:$0xff] %v2155
  %2240 = vst [vmem:[%s8 + $0x1e0] sm:$0xff] %v2156
  %2241 = vst [vmem:[%s8 + $0x1e8] sm:$0xff] %v2157
  %2242 = vst [vmem:[%s8 + $0x1f0] sm:$0xff] %v2158
  %2243 = vst [vmem:[%s8 + $0x1f8] sm:$0xff] %v2159
  %2244 = vst [vmem:[%s8 + $0x208] sm:$0xff] %v2160
  %2245 = vst [vmem:[%s8 + $0x210] sm:$0xff] %v2161
  %2246 = vst [vmem:[%s8 + $0x218] sm:$0xff] %v2162
  %2247 = vst [vmem:[%s8 + $0x220] sm:$0xff] %v2163
  %2248 = vst [vmem:[%s8 + $0x228] sm:$0xff] %v2164
  %2249 = vst [vmem:[%s8 + $0x230] sm:$0xff] %v2165
  %2250 = vst [vmem:[%s8 + $0x238] sm:$0xff] %v2166
  %2251 = vst [vmem:[%s8 + $0x240] sm:$0xff] %v2167
  %2252 = vst [vmem:[%s8 + $0x248] sm:$0xff] %v2168
  %2253 = vst [vmem:[%s8 + $0x250] sm:$0xff] %v2169
  %2254 = vst [vmem:[%s8 + $0x258] sm:$0xff] %v2170
  %2255 = vst [vmem:[%s8 + $0x260] sm:$0xff] %v2171
  %2256 = vst [vmem:[%s8 + $0x270] sm:$0x1] %v2172
  %2257 = vst [vmem:[%s8 + $0x278] sm:$0x1] %v2173
  %2258 = vst [vmem:[%s8 + $0x280] sm:$0x1] %v2174
  %2259 = vst [vmem:[%s8 + $0x288] sm:$0x1] %v2175
  %2260 = vst [vmem:[%s8 + $0x290] sm:$0x1] %v2176
  %2261 = vst [vmem:[%s8 + $0x298] sm:$0x1] %v2177
  %2262 = vst [vmem:[%s8 + $0x2a0] sm:$0x1] %v2178
  %2263 = vst [vmem:[%s8 + $0x2a8] sm:$0x1] %v2179
  %2264 = vst [vmem:[%s8 + $0x2b0] sm:$0x1] %v2180
  %2265 = vst [vmem:[%s8 + $0x2b8] sm:$0x1] %v2181
  %2266 = vst [vmem:[%s8 + $0x2c0] sm:$0x1] %v2182
  %2267 = vst [vmem:[%s8 + $0x2c8] sm:$0x1] %v2183
  %v2268 = vld [vmem:[%s5] sm:$0x1]
  %v2269 = vld [vmem:[%s7] sm:$0x1]
  %v2270 = vadd.f32 %v1138, %v1139
  %v2271 = vadd.f32 %v2270, %v1140
  %v2272 = vadd.f32 %v2271, %v1141
  %v2273 = vadd.f32 %v2272, %v1142
  %v2274 = vadd.f32 %v2273, %v1143
  %v2275 = vsel %vm1238, %v1144, 0.0
  %v2276 = vadd.f32 %v2274, %v2275
  %v2277 = vrot.slane %v2276, 4
  %v2278 = vadd.f32 %v2276, %v2277
  %v2279 = vrot.slane %v2278, 2
  %v2280 = vadd.f32 %v2278, %v2279
  %v2281 = vrot.slane %v2280, 1
  %v2282 = vadd.f32 %v2280, %v2281
  %v2283 = vmul.f32 %v2282, 0.020408163
  %v2284 = vmul.f32 %v1138, %v1138
  %v2285 = vmul.f32 %v1139, %v1139
  %v2286 = vmul.f32 %v1140, %v1140
  %v2287 = vmul.f32 %v1141, %v1141
  %v2288 = vmul.f32 %v1142, %v1142
  %v2289 = vmul.f32 %v1143, %v1143
  %v2290 = vmul.f32 %v1144, %v1144
  %v2291 = vadd.f32 %v2284, %v2285
  %v2292 = vadd.f32 %v2291, %v2286
  %v2293 = vadd.f32 %v2292, %v2287
  %v2294 = vadd.f32 %v2293, %v2288
  %v2295 = vadd.f32 %v2294, %v2289
  %v2296 = vsel %vm1238, %v2290, 0.0
  %v2297 = vadd.f32 %v2295, %v2296
  %v2298 = vrot.slane %v2297, 4
  %v2299 = vadd.f32 %v2297, %v2298
  %v2300 = vrot.slane %v2299, 2
  %v2301 = vadd.f32 %v2299, %v2300
  %v2302 = vrot.slane %v2301, 1
  %v2303 = vadd.f32 %v2301, %v2302
  %v2304 = vmul.f32 %v2303, 0.020408163
  %v2305 = vmul.f32 %v2283, %v2283
  %v2306 = vsub.f32 %v2304, %v2305
  %v2307 = vadd.f32 %v2306, 1e-05
  %v2308 = vrsqrt.pop %v2307
  %v2309 = vmul.f32 %v2268, %v2308
  %v2311 = vlaneseq
  %v2312 = vshrl.u32 %v2311, 7
  %v2313 = vsub.s32 0, %v2312
  %v2314 = vrot.slane %v2309, %v2313
  %v2316 = vmul.f32 %v1138, %v2314
  %v2317 = vmul.f32 %v1139, %v2314
  %v2318 = vmul.f32 %v1140, %v2314
  %v2319 = vmul.f32 %v1141, %v2314
  %v2320 = vmul.f32 %v1142, %v2314
  %v2321 = vmul.f32 %v1143, %v2314
  %v2322 = vmul.f32 %v1144, %v2314
  %v2323 = vmul.f32 %v2283, %v2309
  %v2324 = vsub.f32 %v2269, %v2323
  %v2326 = vlaneseq
  %v2327 = vshrl.u32 %v2326, 7
  %v2328 = vsub.s32 0, %v2327
  %v2329 = vrot.slane %v2324, %v2328
  %v2331 = vadd.f32 %v2316, %v2329
  %v2332 = vadd.f32 %v2317, %v2329
  %v2333 = vadd.f32 %v2318, %v2329
  %v2334 = vadd.f32 %v2319, %v2329
  %v2335 = vadd.f32 %v2320, %v2329
  %v2336 = vadd.f32 %v2321, %v2329
  %v2337 = vadd.f32 %v2322, %v2329
  %2338 = vst [vmem:[%s8 + $0x60] sm:$0xff] %v2331
  %2339 = vst [vmem:[%s8 + $0xc8] sm:$0xff] %v2332
  %2340 = vst [vmem:[%s8 + $0x130] sm:$0xff] %v2333
  %2341 = vst [vmem:[%s8 + $0x198] sm:$0xff] %v2334
  %2342 = vst [vmem:[%s8 + $0x200] sm:$0xff] %v2335
  %2343 = vst [vmem:[%s8 + $0x268] sm:$0xff] %v2336
  %2344 = vst [vmem:[%s8 + $0x2d0] sm:$0x1] %v2337
  // Predicated region
  $region34: #{forward.1} parent=0 // pred_check
    _
  $region35: #{forward.1} parent=0 // pred_check_branch
    %2346 = sbr.rel (0) target = $region37
  $region36: #{forward.1} parent=0 // pred_region
    _
  $region37: #{forward.1} parent=0 // pred_fallthru
    _
  // Predicated region
  $region38: #{forward.1} parent=0 // pred_check
    _
  $region39: #{forward.1} parent=0 // pred_check_branch
    %2348 = sbr.rel (0) target = $region41
  $region40: #{forward.1} parent=0 // pred_region
    _
  $region41: #{forward.1} parent=0 // pred_fallthru
    _

</llo_original>
